<compile_context>
chip_gen: v7x
topology: tpu7x:2x2x1
jax: 0.10.0
libtpu: 0.0.40
codegen_flags: <defaults>
</compile_context>

<pallas_src>
import jax
import jax.numpy as jnp
import numpy as np
from jax.experimental import pallas as pl
from jax.experimental.pallas import tpu as pltpu


def _round_up(x, m):
    return ((x + m - 1) // m) * m


def _vmem_limit_bytes():
    """Generation-aware scoped-VMEM limit (v5e/v6e: 128 MiB physical, v7x: 64 MiB/TC)."""
    try:
        phys = int(pltpu.get_tpu_info().vmem_capacity_bytes)
    except Exception:
        return 32 * 1024 * 1024  # safe default on every generation
    return max(16 * 1024 * 1024, min(int(phys * 0.55), 96 * 1024 * 1024))


def _select_tiles(N, K, D, in_itemsize, e_itemsize, out_itemsize, budget,
                  requested_tn=512, forced_kb=None):
    """Pick (row tile TN, codebook tile KB, padded codebook size Kp) under `budget`."""
    # --- codebook tile (KB): keep the double-buffered codebook block <= budget/4 ---
    per_code_bytes = 2 * D * e_itemsize + 2 * 4      # e row (x2 bufs) + ||e||^2 entry
    if forced_kb is not None:
        kb = int(forced_kb)
    else:
        kb_fit = (budget // 4) // max(per_code_bytes, 1)
        kb = K if kb_fit >= K else max(128, (min(kb_fit, 2048) // 128) * 128)
    if kb >= K:
        kb, kp = K, K                                 # whole codebook per grid step
    else:
        kp = _round_up(K, kb)                         # pad codes never win (e2=+huge)

    # --- row tile (TN): largest 128-multiple whose per-step footprint fits ---
    def footprint(tn):
        return (3 * tn * kb * 4                       # scores / iota / one-hot
                + 2 * tn * D * in_itemsize            # x tile (double-buffered)
                + 2 * tn * D * out_itemsize           # quantized out (double-buffered)
                + tn * D * 4 + 2 * tn * 4             # scratch: acc + best score/idx
                + 2 * kb * D * e_itemsize + 2 * kb * 4  # codebook block + ||e||^2
                + 8 * tn * 4)                         # idx / min-dist out blocks

    tn = max(128, (int(requested_tn) // 128) * 128)
    tn = min(tn, _round_up(max(N, 1), 128))           # don't overshoot tiny inputs
    while tn > 128 and footprint(tn) > budget:
        tn -= 128
    return tn, kb, kp


def _vq_kernel(x_ref, e_ref, e2_ref, q_ref, idx_ref, mind_ref,
               best_d_ref, best_i_ref, acc_ref):
    """Grid = (row tiles, codebook tiles). Running argmin over codebook tiles in
    VMEM scratch; outputs written on the last codebook step."""
    k_step = pl.program_id(1)
    KB = e_ref.shape[0]

    @pl.when(k_step == 0)
    def _():
        best_d_ref[...] = jnp.full_like(best_d_ref, jnp.inf)
        best_i_ref[...] = jnp.zeros_like(best_i_ref)
        acc_ref[...] = jnp.zeros_like(acc_ref)

    x = x_ref[...]                        # (TN, D) input dtype
    e = e_ref[...]                        # (KB, D) codebook dtype
    e2 = e2_ref[...]                      # (1, KB) f32 ||e||^2 (huge for pad codes)

    # x @ e^T without materializing e.T: contract on the shared D axis (MXU).
    dots = jax.lax.dot_general(
        x, e, dimension_numbers=(((1,), (1,)), ((), ())),
        preferred_element_type=jnp.float32)           # (TN, KB)
    # ||x||^2 is row-constant -> irrelevant for the argmin; added later as a scalar.
    scores = e2 - 2.0 * dots                          # (TN, KB)

    loc_min = jnp.min(scores, axis=1, keepdims=True)                  # (TN, 1)
    col = jax.lax.broadcasted_iota(jnp.int32, scores.shape, 1)        # (TN, KB)
    hit = scores <= loc_min
    # first index attaining the min (matches torch.min / jnp.argmin tie behaviour)
    loc_idx = jnp.min(jnp.where(hit, col, KB), axis=1, keepdims=True)  # (TN, 1)

    # one-hot @ codebook block == embedding gather, on the MXU
    onehot = (col == loc_idx).astype(e.dtype)                          # (TN, KB)
    loc_q = jnp.dot(onehot, e, preferred_element_type=jnp.float32)     # (TN, D)

    better = loc_min < best_d_ref[...]                                 # (TN, 1)
    best_d_ref[...] = jnp.where(better, loc_min, best_d_ref[...])
    best_i_ref[...] = jnp.where(better, loc_idx + k_step * KB, best_i_ref[...])
    acc_ref[...] = jnp.where(better, loc_q, acc_ref[...])

    @pl.when(k_step == pl.num_programs(1) - 1)
    def _():
        xf = x.astype(jnp.float32)
        x2 = jnp.sum(xf * xf, axis=1, keepdims=True)                   # (TN, 1)
        # valid rows: torch.norm(x) > 1e-6  <=>  ||x||^2 > 1e-12
        valid = x2 > 1e-12
        q_ref[...] = jnp.where(valid, acc_ref[...], 0.0).astype(q_ref.dtype)
        # true squared distance = ||x||^2 + best score; clamp fp cancellation at 0
        mind = jnp.where(valid, jnp.maximum(best_d_ref[...] + x2, 0.0), 0.0)
        idx = jnp.where(valid, best_i_ref[...], -1)
        # single (TN,1) -> (1,TN) relayout instead of re-reducing over (TN,K)/(TN,D)
        idx_ref[...] = jnp.transpose(idx, (1, 0))
        mind_ref[...] = jnp.transpose(mind, (1, 0))


def vq_forward(inputs, embedding, *, commitment_cost=0.0, perplexity_weight=0.1,
               row_tile=512, codebook_tile=None):
    """Eval-mode forward of VectorQuantizerEMA.

    inputs:    [..., D] float array (channel-last, as the module's view(-1, D) implies)
    embedding: [K, D] codebook
    """
    input_shape = inputs.shape
    K, D = embedding.shape
    flat = inputs.reshape(-1, D)
    N = flat.shape[0]

    in_itemsize = int(jnp.dtype(flat.dtype).itemsize)
    e_itemsize = int(jnp.dtype(embedding.dtype).itemsize)
    out_dtype = flat.dtype
    out_itemsize = int(jnp.dtype(out_dtype).itemsize)

    vmem_limit = _vmem_limit_bytes()
    budget = (vmem_limit * 3) // 5                     # headroom for compiler temps
    TN, KB, Kp = _select_tiles(N, K, D, in_itemsize, e_itemsize, out_itemsize,
                               budget, requested_tn=row_tile, forced_kb=codebook_tile)

    num_row_tiles = pl.cdiv(N, TN)
    Np = num_row_tiles * TN
    if Np != N:
        # zero-pad rows; they fall into the existing "invalid" branch in-kernel
        flat = jnp.pad(flat, ((0, Np - N), (0, 0)))

    ef = embedding.astype(jnp.float32)
    e2 = jnp.sum(ef * ef, axis=1)                      # (K,) hoisted out of the kernel
    emb = embedding
    if Kp != K:
        emb = jnp.pad(embedding, ((0, Kp - K), (0, 0)))
        e2 = jnp.pad(e2, (0, Kp - K), constant_values=1e30)   # pad codes never win
    e2 = e2[None, :]                                   # (1, Kp)
    num_k = Kp // KB

    cost = pl.CostEstimate(
        flops=4 * Np * Kp * D,                         # distance matmul + one-hot gather
        transcendentals=0,
        bytes_accessed=(Np * D * in_itemsize + Np * D * out_itemsize
                        + num_row_tiles * (Kp * D * e_itemsize + Kp * 4)
                        + Np * 8),
    )

    out_shapes = (
        jax.ShapeDtypeStruct((Np, D), out_dtype),      # quantized (flat, padded)
        jax.ShapeDtypeStruct((1, Np), jnp.int32),      # code index (-1 => invalid row)
        jax.ShapeDtypeStruct((1, Np), jnp.float32),    # selected (min) squared distance
    )
    in_specs = [
        pl.BlockSpec((TN, D), lambda i, k: (i, 0)),    # x row tile (constant over k)
        pl.BlockSpec((KB, D), lambda i, k: (k, 0)),    # codebook tile
        pl.BlockSpec((1, KB), lambda i, k: (0, k)),    # precomputed ||e||^2 tile
    ]
    out_specs = (
        pl.BlockSpec((TN, D), lambda i, k: (i, 0)),
        pl.BlockSpec((1, TN), lambda i, k: (0, i)),
        pl.BlockSpec((1, TN), lambda i, k: (0, i)),
    )
    scratch_shapes = [
        pltpu.VMEM((TN, 1), jnp.float32),              # running best score
        pltpu.VMEM((TN, 1), jnp.int32),                # running best code index
        pltpu.VMEM((TN, D), jnp.float32),              # running best code row
    ]

    quant_p, idx_p, mind_p = pl.pallas_call(
        _vq_kernel,
        out_shape=out_shapes,
        grid=(num_row_tiles, num_k),
        in_specs=in_specs,
        out_specs=out_specs,
        scratch_shapes=scratch_shapes,
        compiler_params=pltpu.CompilerParams(
            dimension_semantics=("parallel", "arbitrary"),
            vmem_limit_bytes=vmem_limit),
        cost_estimate=cost,
    )(flat, emb, e2)

    # ---- wrapper-side (cheap XLA) post-processing ----
    quant_flat = quant_p[:N]                           # (N, D) in input dtype
    idx_raw = idx_p[0, :N]                             # (N,) int32, -1 for invalid
    mind_flat = mind_p[0, :N]                          # (N,) >= 0

    valid_mask = idx_raw >= 0
    valid_f = valid_mask.astype(jnp.float32)
    n_valid = jnp.sum(valid_f)
    encoding_indices = jnp.where(valid_mask, idx_raw, 0).astype(jnp.int32)

    # usage counts over valid rows (== sum of one-hot encodings), via scatter-add
    counts = jnp.zeros((K,), jnp.float32).at[encoding_indices].add(valid_f)

    denom = jnp.maximum(n_valid, 1.0)
    # F.mse_loss(valid_flat_input, quantized_valid, reduction='mean') == sum / (n_valid*D)
    loss_commit = jnp.sum(mind_flat) / (denom * D)
    avg_probs = counts / denom
    perplexity = jnp.exp(-jnp.sum(avg_probs * jnp.log(avg_probs + 1e-10)))
    perplexity_loss = -jnp.log(perplexity + 1e-10)
    loss = commitment_cost * loss_commit
    total_loss = loss + perplexity_weight * perplexity_loss

    quantized = quant_flat.reshape(input_shape)
    indices = encoding_indices.reshape(input_shape[:-1])
    min_distances = mind_flat.reshape(input_shape[:-1])

    # straight-through estimator (numerically equal to `quantized` in the forward)
    inputs_f = inputs.astype(quantized.dtype)
    quantized_st = inputs_f + jax.lax.stop_gradient(quantized - inputs_f)

    # TODO(synk): training-mode top-k multinomial sampling and EMA buffer updates
    # (_ema_cluster_size / _ema_w / _usage_count) are stateful host-side updates,
    # not implemented in the kernel.
    # TODO(synk): compute_similarity_metrics uses sklearn on CPU; not translated.
    return {
        "quantized": quantized_st,
        "loss": total_loss,
        "encoding_indices": encoding_indices,
        "indices": indices,
        "min_distances": min_distances,
        "loss_commit": loss_commit,
        "perplexity_loss": perplexity_loss,
        "loss_theta": 0,
        "perplexity": perplexity,
        "usage_count_delta": counts,
        "similarity_metric": None,
    }


def _vq_reference(inputs, embedding):
    """Pure-JAX reference of the same math, for a correctness check."""
    D = embedding.shape[1]
    flat = inputs.reshape(-1, D).astype(jnp.float32)
    valid = jnp.sum(flat * flat, axis=1) > 1e-12
    dist = (jnp.sum(flat ** 2, axis=1, keepdims=True)
            + jnp.sum(embedding ** 2, axis=1)[None, :]
            - 2.0 * flat @ embedding.T)
    idx = jnp.argmin(dist, axis=1)
    quant = embedding[idx]
    quant = jnp.where(valid[:, None], quant, 0.0)
    idx = jnp.where(valid, idx, 0)
    return quant.reshape(inputs.shape), idx


if __name__ == "__main__":
    # Small shapes consistent with the module: batch=2, seq=16, embedding_dim=32,
    # num_embeddings=64.
    B, S, D, K = 2, 16, 32, 64
    key = jax.random.PRNGKey(0)
    k_in, k_emb, k_emb2 = jax.random.split(key, 3)

    inputs = jax.random.normal(k_in, (B, S, D), dtype=jnp.float32)
    # make one token all-zero to exercise the padding / valid_mask path
    inputs = inputs.at[0, 0].set(0.0)
    embedding = jax.random.normal(k_emb, (K, D), dtype=jnp.float32)

    out = vq_forward(inputs, embedding, commitment_cost=0.0, perplexity_weight=0.1)
    jax.block_until_ready(out["quantized"])

    # sanity check against a pure-JAX reference
    q_ref, idx_ref = _vq_reference(inputs, embedding)
    np.testing.assert_allclose(np.asarray(out["quantized"]), np.asarray(q_ref),
                               rtol=1e-3, atol=1e-3)
    np.testing.assert_array_equal(np.asarray(out["encoding_indices"]),
                                  np.asarray(idx_ref).astype(np.int32))
    assert out["quantized"].shape == (B, S, D)
    assert out["indices"].shape == (B, S)
    assert out["min_distances"].shape == (B, S)
    assert float(jnp.min(out["min_distances"])) >= 0.0
    assert np.isfinite(float(out["loss"]))

    # also exercise the K-blocked path (codebook split across the inner grid axis)
    K2 = 256
    embedding2 = jax.random.normal(k_emb2, (K2, D), dtype=jnp.float32)
    out2 = vq_forward(inputs, embedding2, codebook_tile=128)
    jax.block_until_ready(out2["quantized"])
    q_ref2, idx_ref2 = _vq_reference(inputs, embedding2)
    np.testing.assert_allclose(np.asarray(out2["quantized"]), np.asarray(q_ref2),
                               rtol=1e-3, atol=1e-3)
    np.testing.assert_array_equal(np.asarray(out2["encoding_indices"]),
                                  np.asarray(idx_ref2).astype(np.int32))

    print("KERNEL_OK")
</pallas_src>

<mosaic_0001>
module attributes {stable_mosaic.version = 11 : i64} {
  func.func @_vq_kernel(%arg0: i32, %arg1: i32, %arg2: memref<128x32xf32, #tpu.memory_space<vmem>>, %arg3: memref<64x32xf32, #tpu.memory_space<vmem>>, %arg4: memref<1x64xf32, #tpu.memory_space<vmem>>, %arg5: memref<128x32xf32, #tpu.memory_space<vmem>>, %arg6: memref<1x128xi32, #tpu.memory_space<vmem>>, %arg7: memref<1x128xf32, #tpu.memory_space<vmem>>, %arg8: memref<128x1xf32, #tpu.memory_space<vmem>>, %arg9: memref<128x1xi32, #tpu.memory_space<vmem>>, %arg10: memref<128x32xf32, #tpu.memory_space<vmem>>) attributes {dimension_semantics = [#tpu.dimension_semantics<parallel>, #tpu.dimension_semantics<arbitrary>], iteration_bounds = array<i64: 1, 1>, scalar_prefetch = 0 : i64, scratch_operands = 3 : i64, tpu.core_type = #tpu.core_type<tc>, window_params = [{transform_indices = @transform_0, window_bounds = array<i64: 128, 32>}, {transform_indices = @transform_1, window_bounds = array<i64: 64, 32>}, {transform_indices = @transform_2, window_bounds = array<i64: 1, 64>}, {transform_indices = @transform_3, window_bounds = array<i64: 128, 32>}, {transform_indices = @transform_4, window_bounds = array<i64: 1, 128>}, {transform_indices = @transform_5, window_bounds = array<i64: 1, 128>}]} {
    %c0_i32 = arith.constant 0 : i32
    %0 = arith.cmpi eq, %arg1, %c0_i32 : i32
    %1 = arith.extui %0 : i1 to i32
    %c0_i32_0 = arith.constant 0 : i32
    %2 = arith.cmpi ne, %1, %c0_i32_0 : i32
    scf.if %2 {
      %cst_27 = arith.constant 0x7F800000 : f32
      %44 = vector.broadcast %cst_27 : f32 to vector<128x1xf32>
      %c0_28 = arith.constant 0 : index
      %c0_29 = arith.constant 0 : index
      %45 = vector.load %arg8[%c0_28, %c0_29] : memref<128x1xf32, #tpu.memory_space<vmem>>, vector<128x1xf32>
      tpu.vector_store %arg8[%c0_28, %c0_29], %44 {strides = array<i32>} : memref<128x1xf32, #tpu.memory_space<vmem>>, vector<128x1xf32>,
      %c0_i32_30 = arith.constant 0 : i32
      %46 = vector.broadcast %c0_i32_30 : i32 to vector<128x1xi32>
      %c0_31 = arith.constant 0 : index
      %c0_32 = arith.constant 0 : index
      %47 = vector.load %arg9[%c0_31, %c0_32] : memref<128x1xi32, #tpu.memory_space<vmem>>, vector<128x1xi32>
      tpu.vector_store %arg9[%c0_31, %c0_32], %46 {strides = array<i32>} : memref<128x1xi32, #tpu.memory_space<vmem>>, vector<128x1xi32>,
      %cst_33 = arith.constant 0.000000e+00 : f32
      %48 = vector.broadcast %cst_33 : f32 to vector<128x32xf32>
      %c0_34 = arith.constant 0 : index
      %c0_35 = arith.constant 0 : index
      %49 = vector.load %arg10[%c0_34, %c0_35] : memref<128x32xf32, #tpu.memory_space<vmem>>, vector<128x32xf32>
      tpu.vector_store %arg10[%c0_34, %c0_35], %48 {strides = array<i32>} : memref<128x32xf32, #tpu.memory_space<vmem>>, vector<128x32xf32>,
    } else {
    }
    %c0 = arith.constant 0 : index
    %c0_1 = arith.constant 0 : index
    %3 = vector.load %arg2[%c0, %c0_1] : memref<128x32xf32, #tpu.memory_space<vmem>>, vector<128x32xf32>
    %c0_2 = arith.constant 0 : index
    %c0_3 = arith.constant 0 : index
    %4 = vector.load %arg3[%c0_2, %c0_3] : memref<64x32xf32, #tpu.memory_space<vmem>>, vector<64x32xf32>
    %c0_4 = arith.constant 0 : index
    %c0_5 = arith.constant 0 : index
    %5 = vector.load %arg4[%c0_4, %c0_5] : memref<1x64xf32, #tpu.memory_space<vmem>>, vector<1x64xf32>
    %cst = arith.constant dense<0.000000e+00> : vector<128x64xf32>
    %6 = tpu.matmul %3, %4, %cst {dimension_numbers = #tpu.dot_dimension_numbers<[1], [1], [0], [0], [0, 0, 1, 0], [], []>} : vector<128x32xf32>, vector<64x32xf32>, vector<128x64xf32> -> vector<128x64xf32>
    %cst_6 = arith.constant 2.000000e+00 : f32
    %7 = vector.broadcast %cst_6 : f32 to vector<128x64xf32>
    %8 = arith.mulf %7, %6 : vector<128x64xf32>
    %9 = vector.broadcast %5 : vector<1x64xf32> to vector<128x64xf32>
    %10 = arith.subf %9, %8 : vector<128x64xf32>
    %cst_7 = arith.constant dense<0x7F800000> : vector<128xf32>
    %11 = vector.multi_reduction <minimumf>, %10, %cst_7 [1] : vector<128x64xf32> to vector<128xf32>
    %12 = vector.shape_cast %11 : vector<128xf32> to vector<128x1xf32>
    %13 = tpu.iota {dimensions = array<i32: 1>} : vector<128x64xi32>
    %14 = vector.broadcast %12 : vector<128x1xf32> to vector<128x64xf32>
    %15 = arith.cmpf ole, %10, %14 : vector<128x64xf32>
    %c64_i32 = arith.constant 64 : i32
    %16 = vector.broadcast %c64_i32 : i32 to vector<128x64xi32>
    %17 = arith.select %15, %13, %16 : vector<128x64xi1>, vector<128x64xi32>
    %cst_8 = arith.constant dense<2147483647> : vector<128xi32>
    %18 = vector.multi_reduction <minsi>, %17, %cst_8 [1] : vector<128x64xi32> to vector<128xi32>
    %19 = vector.shape_cast %18 : vector<128xi32> to vector<128x1xi32>
    %20 = vector.broadcast %19 : vector<128x1xi32> to vector<128x64xi32>
    %21 = arith.cmpi eq, %13, %20 : vector<128x64xi32>
    %22 = arith.extui %21 : vector<128x64xi1> to vector<128x64xi32>
    %23 = arith.sitofp %22 : vector<128x64xi32> to vector<128x64xf32>
    %cst_9 = arith.constant dense<0.000000e+00> : vector<128x32xf32>
    %24 = tpu.matmul %23, %4, %cst_9 {dimension_numbers = #tpu.dot_dimension_numbers<[1], [0], [0], [1], [0, 0, 1, 1], [], []>} : vector<128x64xf32>, vector<64x32xf32>, vector<128x32xf32> -> vector<128x32xf32>
    %c0_10 = arith.constant 0 : index
    %c0_11 = arith.constant 0 : index
    %25 = vector.load %arg8[%c0_10, %c0_11] : memref<128x1xf32, #tpu.memory_space<vmem>>, vector<128x1xf32>
    %26 = arith.cmpf olt, %12, %25 : vector<128x1xf32>
    %c0_12 = arith.constant 0 : index
    %c0_13 = arith.constant 0 : index
    %27 = vector.load %arg8[%c0_12, %c0_13] : memref<128x1xf32, #tpu.memory_space<vmem>>, vector<128x1xf32>
    %28 = arith.select %26, %12, %27 : vector<128x1xi1>, vector<128x1xf32>
    %c0_14 = arith.constant 0 : index
    %c0_15 = arith.constant 0 : index
    %29 = vector.load %arg8[%c0_14, %c0_15] : memref<128x1xf32, #tpu.memory_space<vmem>>, vector<128x1xf32>
    tpu.vector_store %arg8[%c0_14, %c0_15], %28 {strides = array<i32>} : memref<128x1xf32, #tpu.memory_space<vmem>>, vector<128x1xf32>,
    %c64_i32_16 = arith.constant 64 : i32
    %30 = arith.muli %arg1, %c64_i32_16 : i32
    %31 = vector.broadcast %30 : i32 to vector<128x1xi32>
    %32 = arith.addi %19, %31 : vector<128x1xi32>
    %c0_17 = arith.constant 0 : index
    %c0_18 = arith.constant 0 : index
    %33 = vector.load %arg9[%c0_17, %c0_18] : memref<128x1xi32, #tpu.memory_space<vmem>>, vector<128x1xi32>
    %34 = arith.select %26, %32, %33 : vector<128x1xi1>, vector<128x1xi32>
    %c0_19 = arith.constant 0 : index
    %c0_20 = arith.constant 0 : index
    %35 = vector.load %arg9[%c0_19, %c0_20] : memref<128x1xi32, #tpu.memory_space<vmem>>, vector<128x1xi32>
    tpu.vector_store %arg9[%c0_19, %c0_20], %34 {strides = array<i32>} : memref<128x1xi32, #tpu.memory_space<vmem>>, vector<128x1xi32>,
    %c0_21 = arith.constant 0 : index
    %c0_22 = arith.constant 0 : index
    %36 = vector.load %arg10[%c0_21, %c0_22] : memref<128x32xf32, #tpu.memory_space<vmem>>, vector<128x32xf32>
    %37 = vector.shape_cast %26 : vector<128x1xi1> to vector<128x1xi1>
    %38 = vector.broadcast %37 : vector<128x1xi1> to vector<128x32xi1>
    %39 = arith.select %38, %24, %36 : vector<128x32xi1>, vector<128x32xf32>
    %c0_23 = arith.constant 0 : index
    %c0_24 = arith.constant 0 : index
    %40 = vector.load %arg10[%c0_23, %c0_24] : memref<128x32xf32, #tpu.memory_space<vmem>>, vector<128x32xf32>
    tpu.vector_store %arg10[%c0_23, %c0_24], %39 {strides = array<i32>} : memref<128x32xf32, #tpu.memory_space<vmem>>, vector<128x32xf32>,
    %c0_i32_25 = arith.constant 0 : i32
    %41 = arith.cmpi eq, %arg1, %c0_i32_25 : i32
    %42 = arith.extui %41 : i1 to i32
    %c0_i32_26 = arith.constant 0 : i32
    %43 = arith.cmpi ne, %42, %c0_i32_26 : i32
    scf.if %43 {
      %44 = arith.mulf %3, %3 : vector<128x32xf32>
      %cst_27 = arith.constant dense<0.000000e+00> : vector<128xf32>
      %45 = vector.multi_reduction <add>, %44, %cst_27 [1] : vector<128x32xf32> to vector<128xf32>
      %46 = vector.shape_cast %45 : vector<128xf32> to vector<128x1xf32>
      %cst_28 = arith.constant 9.99999996E-13 : f32
      %47 = vector.broadcast %cst_28 : f32 to vector<128x1xf32>
      %48 = arith.cmpf ogt, %46, %47 : vector<128x1xf32>
      %c0_29 = arith.constant 0 : index
      %c0_30 = arith.constant 0 : index
      %49 = vector.load %arg10[%c0_29, %c0_30] : memref<128x32xf32, #tpu.memory_space<vmem>>, vector<128x32xf32>
      %cst_31 = arith.constant 0.000000e+00 : f32
      %50 = vector.shape_cast %48 : vector<128x1xi1> to vector<128x1xi1>
      %51 = vector.broadcast %50 : vector<128x1xi1> to vector<128x32xi1>
      %52 = vector.broadcast %cst_31 : f32 to vector<128x32xf32>
      %53 = arith.select %51, %49, %52 : vector<128x32xi1>, vector<128x32xf32>
      %c0_32 = arith.constant 0 : index
      %c0_33 = arith.constant 0 : index
      %54 = vector.load %arg5[%c0_32, %c0_33] : memref<128x32xf32, #tpu.memory_space<vmem>>, vector<128x32xf32>
      tpu.vector_store %arg5[%c0_32, %c0_33], %53 {strides = array<i32>} : memref<128x32xf32, #tpu.memory_space<vmem>>, vector<128x32xf32>,
      %c0_34 = arith.constant 0 : index
      %c0_35 = arith.constant 0 : index
      %55 = vector.load %arg8[%c0_34, %c0_35] : memref<128x1xf32, #tpu.memory_space<vmem>>, vector<128x1xf32>
      %56 = arith.addf %55, %46 : vector<128x1xf32>
      %cst_36 = arith.constant 0.000000e+00 : f32
      %57 = vector.broadcast %cst_36 : f32 to vector<128x1xf32>
      %58 = arith.maximumf %56, %57 : vector<128x1xf32>
      %cst_37 = arith.constant 0.000000e+00 : f32
      %59 = vector.broadcast %cst_37 : f32 to vector<128x1xf32>
      %60 = arith.select %48, %58, %59 : vector<128x1xi1>, vector<128x1xf32>
      %c0_38 = arith.constant 0 : index
      %c0_39 = arith.constant 0 : index
      %61 = vector.load %arg9[%c0_38, %c0_39] : memref<128x1xi32, #tpu.memory_space<vmem>>, vector<128x1xi32>
      %c-1_i32 = arith.constant -1 : i32
      %62 = vector.broadcast %c-1_i32 : i32 to vector<128x1xi32>
      %63 = arith.select %48, %61, %62 : vector<128x1xi1>, vector<128x1xi32>
      %64 = tpu.transpose %63, [1, 0] : vector<128x1xi32> -> vector<1x128xi32>
      %c0_40 = arith.constant 0 : index
      %c0_41 = arith.constant 0 : index
      %65 = vector.load %arg6[%c0_40, %c0_41] : memref<1x128xi32, #tpu.memory_space<vmem>>, vector<1x128xi32>
      tpu.vector_store %arg6[%c0_40, %c0_41], %64 {strides = array<i32>} : memref<1x128xi32, #tpu.memory_space<vmem>>, vector<1x128xi32>,
      %66 = tpu.transpose %60, [1, 0] : vector<128x1xf32> -> vector<1x128xf32>
      %c0_42 = arith.constant 0 : index
      %c0_43 = arith.constant 0 : index
      %67 = vector.load %arg7[%c0_42, %c0_43] : memref<1x128xf32, #tpu.memory_space<vmem>>, vector<1x128xf32>
      tpu.vector_store %arg7[%c0_42, %c0_43], %66 {strides = array<i32>} : memref<1x128xf32, #tpu.memory_space<vmem>>, vector<1x128xf32>,
    } else {
    }
    return
  }
  func.func @transform_0(%arg0: i32, %arg1: i32) -> (i32, i32) {
    %c0_i32 = arith.constant 0 : i32
    %c0_i32_0 = arith.constant 0 : i32
    return %arg0, %c0_i32 : i32, i32
  }
  func.func @transform_1(%arg0: i32, %arg1: i32) -> (i32, i32) {
    %c0_i32 = arith.constant 0 : i32
    %c0_i32_0 = arith.constant 0 : i32
    return %arg1, %c0_i32 : i32, i32
  }
  func.func @transform_2(%arg0: i32, %arg1: i32) -> (i32, i32) {
    %c0_i32 = arith.constant 0 : i32
    %c0_i32_0 = arith.constant 0 : i32
    return %c0_i32, %arg1 : i32, i32
  }
  func.func @transform_3(%arg0: i32, %arg1: i32) -> (i32, i32) {
    %c0_i32 = arith.constant 0 : i32
    %c0_i32_0 = arith.constant 0 : i32
    return %arg0, %c0_i32 : i32, i32
  }
  func.func @transform_4(%arg0: i32, %arg1: i32) -> (i32, i32) {
    %c0_i32 = arith.constant 0 : i32
    %c0_i32_0 = arith.constant 0 : i32
    return %c0_i32, %arg0 : i32, i32
  }
  func.func @transform_5(%arg0: i32, %arg1: i32) -> (i32, i32) {
    %c0_i32 = arith.constant 0 : i32
    %c0_i32_0 = arith.constant 0 : i32
    return %c0_i32, %arg0 : i32, i32
  }
}

</mosaic_0001>

<llo_original>
// kernel: tpu_custom_call.1
$region0: #{tpu_custom_call.1}
  #allocation0 [shape = 'u32[]', space=smem, size = 0x4, offset = 0x4, fixed_abs, tag = 'smem constant byte address 0x4 - core index']
  #allocation1 [shape = 'u32[144,128]{1,0:T(1,128)}', space=vmem, size = 0x12000, scoped, tag = 'internal scratch']
  #allocation2 [shape = 'f32[128,1]{1,0:T(8,128)}', space=vmem, size = 0x10000, scoped, tag = 'scratch operand']
  #allocation3 [shape = 's32[128,1]{1,0:T(8,128)}', space=vmem, size = 0x10000, scoped, tag = 'scratch operand']
  #allocation4 [shape = 'f32[128,32]{1,0:T(8,128)}', space=vmem, size = 0x10000, scoped, tag = 'scratch operand']
  %s0 = inlined_call_operand.vmem [shape: f32[128,32], index: 0, kind: input, shape index: {}]
  %s1 = inlined_call_operand.vmem [shape: f32[64,32], index: 1, kind: input, shape index: {}]
  %s2 = inlined_call_operand.vmem [shape: f32[1,64], index: 2, kind: input, shape index: {}]
  %s3 = inlined_call_operand.vmem [shape: f32[128,32], index: 3, kind: output, shape index: {0}]
  %s4 = inlined_call_operand.hbm [shape: s32[1,128], index: 4, kind: output, shape index: {1}]
  %s5 = inlined_call_operand.hbm [shape: f32[1,128], index: 5, kind: output, shape index: {2}]
  %6 = xla_tuple %s3, %s4, %s5
  %s7 = sld [smem:[#allocation0]]
  $region46: #{tpu_custom_call.1} parent=0
    _
  %s9 = ssub.s32 1, %s7
  %s10 = scalar_select 0, %s9, %s7
  $region1: #{tpu_custom_call.1} parent=0
    #allocation5 [shape = 'u8[512]{0}', space=vmem, size = 0x400, scoped, tag = 'output window, operand 1, single buffered']
    #allocation6 [shape = 's32[1]{0}', space=sflag, size = 0x4, scoped, tag = 'scoped memory for tpu_custom_call.1']
    #allocation7 [shape = 'u8[512]{0}', space=vmem, size = 0x400, scoped, tag = 'output window, operand 2, single buffered']
    #allocation8 [shape = 's32[1]{0}', space=sflag, size = 0x4, scoped, tag = 'scoped memory for tpu_custom_call.1']
    %11 = vsyncpa [#allocation6], 0
    %12 = vsyncpa [#allocation8], 0
    // Predicated region
    $region2: #{tpu_custom_call.1} parent=1 // pred_check
      _
    $region3: #{tpu_custom_call.1} parent=1 // pred_check_branch
      %14 = sbr.rel (0) target = $region5
    $region4: #{tpu_custom_call.1} parent=1 // pred_region
      _
    $region5: #{tpu_custom_call.1} parent=1 // pred_fallthru
      _
    // Predicated region
    $region6: #{tpu_custom_call.1} parent=1 // pred_check
      _
    $region7: #{tpu_custom_call.1} parent=1 // pred_check_branch
      %16 = sbr.rel (0) target = $region9
    $region8: #{tpu_custom_call.1} parent=1 // pred_region
      _
    $region9: #{tpu_custom_call.1} parent=1 // pred_fallthru
      _
    // Predicated region
    $region10: #{tpu_custom_call.1} parent=1 // pred_check
      _
    $region11: #{tpu_custom_call.1} parent=1 // pred_check_branch
      %18 = sbr.rel (0) target = $region13
    $region12: #{tpu_custom_call.1} parent=1 // pred_region
      _
    $region13: #{tpu_custom_call.1} parent=1 // pred_fallthru
      _
    %p19 = scmp.eq.s32.totalorder 0, 0
    // Predicated region
    $region14: #{tpu_custom_call.1} parent=1 // pred_check
      %p20 = pneg %p19
    $region15: #{tpu_custom_call.1} parent=1 // pred_check_branch
      %22 = sbr.rel (%p20) target = $region17
    $region16: #{tpu_custom_call.1} parent=1 // pred_region
      %vm23 = vcmask 7168
      %24 = vst.msk [vmem:[#allocation2] sm:$0xff] %vm23, inf
      %25 = vst.msk [vmem:[#allocation2 + $0x8] sm:$0xff] %vm23, inf
      %26 = vst.msk [vmem:[#allocation2 + $0x10] sm:$0xff] %vm23, inf
      %27 = vst.msk [vmem:[#allocation2 + $0x18] sm:$0xff] %vm23, inf
      %28 = vst.msk [vmem:[#allocation2 + $0x20] sm:$0xff] %vm23, inf
      %29 = vst.msk [vmem:[#allocation2 + $0x28] sm:$0xff] %vm23, inf
      %30 = vst.msk [vmem:[#allocation2 + $0x30] sm:$0xff] %vm23, inf
      %31 = vst.msk [vmem:[#allocation2 + $0x38] sm:$0xff] %vm23, inf
      %32 = vst.msk [vmem:[#allocation2 + $0x40] sm:$0xff] %vm23, inf
      %33 = vst.msk [vmem:[#allocation2 + $0x48] sm:$0xff] %vm23, inf
      %34 = vst.msk [vmem:[#allocation2 + $0x50] sm:$0xff] %vm23, inf
      %35 = vst.msk [vmem:[#allocation2 + $0x58] sm:$0xff] %vm23, inf
      %36 = vst.msk [vmem:[#allocation2 + $0x60] sm:$0xff] %vm23, inf
      %37 = vst.msk [vmem:[#allocation2 + $0x68] sm:$0xff] %vm23, inf
      %38 = vst.msk [vmem:[#allocation2 + $0x70] sm:$0xff] %vm23, inf
      %39 = vst.msk [vmem:[#allocation2 + $0x78] sm:$0xff] %vm23, inf
      %40 = vst.msk [vmem:[#allocation3] sm:$0xff] %vm23, 0
      %41 = vst.msk [vmem:[#allocation3 + $0x8] sm:$0xff] %vm23, 0
      %42 = vst.msk [vmem:[#allocation3 + $0x10] sm:$0xff] %vm23, 0
      %43 = vst.msk [vmem:[#allocation3 + $0x18] sm:$0xff] %vm23, 0
      %44 = vst.msk [vmem:[#allocation3 + $0x20] sm:$0xff] %vm23, 0
      %45 = vst.msk [vmem:[#allocation3 + $0x28] sm:$0xff] %vm23, 0
      %46 = vst.msk [vmem:[#allocation3 + $0x30] sm:$0xff] %vm23, 0
      %47 = vst.msk [vmem:[#allocation3 + $0x38] sm:$0xff] %vm23, 0
      %48 = vst.msk [vmem:[#allocation3 + $0x40] sm:$0xff] %vm23, 0
      %49 = vst.msk [vmem:[#allocation3 + $0x48] sm:$0xff] %vm23, 0
      %50 = vst.msk [vmem:[#allocation3 + $0x50] sm:$0xff] %vm23, 0
      %51 = vst.msk [vmem:[#allocation3 + $0x58] sm:$0xff] %vm23, 0
      %52 = vst.msk [vmem:[#allocation3 + $0x60] sm:$0xff] %vm23, 0
      %53 = vst.msk [vmem:[#allocation3 + $0x68] sm:$0xff] %vm23, 0
      %54 = vst.msk [vmem:[#allocation3 + $0x70] sm:$0xff] %vm23, 0
      %55 = vst.msk [vmem:[#allocation3 + $0x78] sm:$0xff] %vm23, 0
      %vm56 = vcmask 261120
      %57 = vst.msk [vmem:[#allocation4] sm:$0xff] %vm56, 0.0
      %58 = vst.msk [vmem:[#allocation4 + $0x8] sm:$0xff] %vm56, 0.0
      %59 = vst.msk [vmem:[#allocation4 + $0x10] sm:$0xff] %vm56, 0.0
      %60 = vst.msk [vmem:[#allocation4 + $0x18] sm:$0xff] %vm56, 0.0
      %61 = vst.msk [vmem:[#allocation4 + $0x20] sm:$0xff] %vm56, 0.0
      %62 = vst.msk [vmem:[#allocation4 + $0x28] sm:$0xff] %vm56, 0.0
      %63 = vst.msk [vmem:[#allocation4 + $0x30] sm:$0xff] %vm56, 0.0
      %64 = vst.msk [vmem:[#allocation4 + $0x38] sm:$0xff] %vm56, 0.0
      %65 = vst.msk [vmem:[#allocation4 + $0x40] sm:$0xff] %vm56, 0.0
      %66 = vst.msk [vmem:[#allocation4 + $0x48] sm:$0xff] %vm56, 0.0
      %67 = vst.msk [vmem:[#allocation4 + $0x50] sm:$0xff] %vm56, 0.0
      %68 = vst.msk [vmem:[#allocation4 + $0x58] sm:$0xff] %vm56, 0.0
      %69 = vst.msk [vmem:[#allocation4 + $0x60] sm:$0xff] %vm56, 0.0
      %70 = vst.msk [vmem:[#allocation4 + $0x68] sm:$0xff] %vm56, 0.0
      %71 = vst.msk [vmem:[#allocation4 + $0x70] sm:$0xff] %vm56, 0.0
      %72 = vst.msk [vmem:[#allocation4 + $0x78] sm:$0xff] %vm56, 0.0
    $region17: #{tpu_custom_call.1} parent=1 // pred_fallthru
      _
    %v73 = vld [vmem:[%s0] sm:$0xff]
    %v74 = vld [vmem:[%s0 + $0x8] sm:$0xff]
    %v75 = vld [vmem:[%s0 + $0x10] sm:$0xff]
    %v76 = vld [vmem:[%s0 + $0x18] sm:$0xff]
    %v77 = vld [vmem:[%s0 + $0x20] sm:$0xff]
    %v78 = vld [vmem:[%s0 + $0x28] sm:$0xff]
    %v79 = vld [vmem:[%s0 + $0x30] sm:$0xff]
    %v80 = vld [vmem:[%s0 + $0x38] sm:$0xff]
    %v81 = vld [vmem:[%s0 + $0x40] sm:$0xff]
    %v82 = vld [vmem:[%s0 + $0x48] sm:$0xff]
    %v83 = vld [vmem:[%s0 + $0x50] sm:$0xff]
    %v84 = vld [vmem:[%s0 + $0x58] sm:$0xff]
    %v85 = vld [vmem:[%s0 + $0x60] sm:$0xff]
    %v86 = vld [vmem:[%s0 + $0x68] sm:$0xff]
    %v87 = vld [vmem:[%s0 + $0x70] sm:$0xff]
    %v88 = vld [vmem:[%s0 + $0x78] sm:$0xff]
    %v89 = vld [vmem:[%s1] sm:$0xff]
    %v90 = vld [vmem:[%s1 + $0x8] sm:$0xff]
    %v91 = vld [vmem:[%s1 + $0x10] sm:$0xff]
    %v92 = vld [vmem:[%s1 + $0x18] sm:$0xff]
    %v93 = vld [vmem:[%s1 + $0x20] sm:$0xff]
    %v94 = vld [vmem:[%s1 + $0x28] sm:$0xff]
    %v95 = vld [vmem:[%s1 + $0x30] sm:$0xff]
    %v96 = vld [vmem:[%s1 + $0x38] sm:$0xff]
    %v97 = vld [vmem:[%s2] sm:$0x1]
    %vm98 = vcmask 261120
    %v100 = vsel %vm98, %v73, 0
    %v103 = vsel %vm98, %v74, 0
    %v106 = vsel %vm98, %v75, 0
    %v109 = vsel %vm98, %v76, 0
    %v112 = vsel %vm98, %v77, 0
    %v115 = vsel %vm98, %v78, 0
    %v118 = vsel %vm98, %v79, 0
    %v121 = vsel %vm98, %v80, 0
    %v124 = vsel %vm98, %v81, 0
    %v127 = vsel %vm98, %v82, 0
    %v130 = vsel %vm98, %v83, 0
    %v133 = vsel %vm98, %v84, 0
    %v136 = vsel %vm98, %v85, 0
    %v139 = vsel %vm98, %v86, 0
    %v142 = vsel %vm98, %v87, 0
    %v145 = vsel %vm98, %v88, 0
    %v148 = vsel %vm98, %v89, 0
    %v151 = vsel %vm98, %v90, 0
    %v154 = vsel %vm98, %v91, 0
    %v157 = vsel %vm98, %v92, 0
    %v160 = vsel %vm98, %v93, 0
    %v163 = vsel %vm98, %v94, 0
    %v166 = vsel %vm98, %v95, 0
    %v169 = vsel %vm98, %v96, 0
    %171 = vmatprep.subr.mxu0 0.0
    %172 = vmatpush1.xpose.msra.mxu0 %v148
    %173 = vmatprep.subr.mxu0 0.0
    %174 = vmatpush1.xpose.msra.mxu0 %v151
    %175 = vmatprep.subr.mxu0 0.0
    %176 = vmatpush1.xpose.msra.mxu0 %v154
    %177 = vmatprep.subr.mxu0 0.0
    %178 = vmatpush1.xpose.msra.mxu0 %v157
    %179 = vmatprep.subr.mxu0 0.0
    %180 = vmatpush1.xpose.msra.mxu0 %v160
    %181 = vmatprep.subr.mxu0 0.0
    %182 = vmatpush1.xpose.msra.mxu0 %v163
    %183 = vmatprep.subr.mxu0 0.0
    %184 = vmatpush1.xpose.msra.mxu0 %v166
    %185 = vmatprep.subr.mxu0 0.0
    %186 = vmatpush1.xpose.msra.mxu0 %v169
    %187 = vmatprep.subr.mxu0 0.0
    %188 = vmatpush1.xpose.msra.mxu0 0.0
    %189 = vmatprep.subr.mxu0 0.0
    %190 = vmatpush1.xpose.msra.mxu0 0.0
    %191 = vmatprep.subr.mxu0 0.0
    %192 = vmatpush1.xpose.msra.mxu0 0.0
    %193 = vmatprep.subr.mxu0 0.0
    %194 = vmatpush1.xpose.msra.mxu0 0.0
    %195 = vmatprep.subr.mxu0 0.0
    %196 = vmatpush1.xpose.msra.mxu0 0.0
    %197 = vmatprep.subr.mxu0 0.0
    %198 = vmatpush1.xpose.msra.mxu0 0.0
    %199 = vmatprep.subr.mxu0 0.0
    %200 = vmatpush1.xpose.msra.mxu0 0.0
    %201 = vmatprep.subr.mxu0 0.0
    %202 = vmatpush1.xpose.msra.mxu0 0.0
    %203 = vmatprep.subr.mxu0 0.0
    %204 = vmatpush1.xpose.msra.mxu0 0.0
    %205 = vmatprep.subr.mxu0 0.0
    %206 = vmatpush1.xpose.msra.mxu0 0.0
    %207 = vmatprep.subr.mxu0 0.0
    %208 = vmatpush1.xpose.msra.mxu0 0.0
    %209 = vmatprep.subr.mxu0 0.0
    %210 = vmatpush1.xpose.msra.mxu0 0.0
    %211 = vmatprep.subr.mxu0 0.0
    %212 = vmatpush1.xpose.msra.mxu0 0.0
    %213 = vmatprep.subr.mxu0 0.0
    %214 = vmatpush1.xpose.msra.mxu0 0.0
    %215 = vmatprep.subr.mxu0 0.0
    %216 = vmatpush1.xpose.msra.mxu0 0.0
    %217 = vmatprep.subr.mxu0 0.0
    %218 = vmatpush1.xpose.msra.mxu0 0.0
    %219 = vmatprep.subr.mxu0 0.0
    %220 = vmatpush1.xpose.msra.mxu0 0.0
    %221 = vmatprep.subr.mxu0 0.0
    %222 = vmatpush1.xpose.msra.mxu0 0.0
    %223 = vmatprep.subr.mxu0 0.0
    %224 = vmatpush1.xpose.msra.mxu0 0.0
    %225 = vmatprep.subr.mxu0 0.0
    %226 = vmatpush1.xpose.msra.mxu0 0.0
    %227 = vmatprep.subr.mxu0 0.0
    %228 = vmatpush1.xpose.msra.mxu0 0.0
    %229 = vmatprep.subr.mxu0 0.0
    %230 = vmatpush1.xpose.msra.mxu0 0.0
    %231 = vmatprep.subr.mxu0 0.0
    %232 = vmatpush1.xpose.msra.mxu0 0.0
    %233 = vmatprep.subr.mxu0 0.0
    %234 = vmatpush1.xpose.msra.mxu0 0.0
    %235 = vmatprep.mubr.f32.mxu0 0.0
    %236 = vmatmul.mubr.f32.gmra.mrb[0].mxu0 %v100
    %v237 = vpop.f32.mrb[0].mxu0
    %v238 = vadd.f32 0.0, %v237
    %v239 = vpop.f32.mrb[0].mxu0
    %240 = vmatprep.mubr.f32.mxu0 0.0
    %241 = vmatmul.mubr.f32.gmra.mrb[0].mxu0 %v103
    %v242 = vpop.f32.mrb[0].mxu0
    %v243 = vadd.f32 0.0, %v242
    %v244 = vpop.f32.mrb[0].mxu0
    %245 = vmatprep.mubr.f32.mxu0 0.0
    %246 = vmatmul.mubr.f32.gmra.mrb[0].mxu0 %v106
    %v247 = vpop.f32.mrb[0].mxu0
    %v248 = vadd.f32 0.0, %v247
    %v249 = vpop.f32.mrb[0].mxu0
    %250 = vmatprep.mubr.f32.mxu0 0.0
    %251 = vmatmul.mubr.f32.gmra.mrb[0].mxu0 %v109
    %v252 = vpop.f32.mrb[0].mxu0
    %v253 = vadd.f32 0.0, %v252
    %v254 = vpop.f32.mrb[0].mxu0
    %255 = vmatprep.mubr.f32.mxu0 0.0
    %256 = vmatmul.mubr.f32.gmra.mrb[0].mxu0 %v112
    %v257 = vpop.f32.mrb[0].mxu0
    %v258 = vadd.f32 0.0, %v257
    %v259 = vpop.f32.mrb[0].mxu0
    %260 = vmatprep.mubr.f32.mxu0 0.0
    %261 = vmatmul.mubr.f32.gmra.mrb[0].mxu0 %v115
    %v262 = vpop.f32.mrb[0].mxu0
    %v263 = vadd.f32 0.0, %v262
    %v264 = vpop.f32.mrb[0].mxu0
    %265 = vmatprep.mubr.f32.mxu0 0.0
    %266 = vmatmul.mubr.f32.gmra.mrb[0].mxu0 %v118
    %v267 = vpop.f32.mrb[0].mxu0
    %v268 = vadd.f32 0.0, %v267
    %v269 = vpop.f32.mrb[0].mxu0
    %270 = vmatprep.mubr.f32.mxu0 0.0
    %271 = vmatmul.mubr.f32.gmra.mrb[0].mxu0 %v121
    %v272 = vpop.f32.mrb[0].mxu0
    %v273 = vadd.f32 0.0, %v272
    %v274 = vpop.f32.mrb[0].mxu0
    %275 = vmatprep.mubr.f32.mxu0 0.0
    %276 = vmatmul.mubr.f32.gmra.mrb[0].mxu0 %v124
    %v277 = vpop.f32.mrb[0].mxu0
    %v278 = vadd.f32 0.0, %v277
    %v279 = vpop.f32.mrb[0].mxu0
    %280 = vmatprep.mubr.f32.mxu0 0.0
    %281 = vmatmul.mubr.f32.gmra.mrb[0].mxu0 %v127
    %v282 = vpop.f32.mrb[0].mxu0
    %v283 = vadd.f32 0.0, %v282
    %v284 = vpop.f32.mrb[0].mxu0
    %285 = vmatprep.mubr.f32.mxu0 0.0
    %286 = vmatmul.mubr.f32.gmra.mrb[0].mxu0 %v130
    %v287 = vpop.f32.mrb[0].mxu0
    %v288 = vadd.f32 0.0, %v287
    %v289 = vpop.f32.mrb[0].mxu0
    %290 = vmatprep.mubr.f32.mxu0 0.0
    %291 = vmatmul.mubr.f32.gmra.mrb[0].mxu0 %v133
    %v292 = vpop.f32.mrb[0].mxu0
    %v293 = vadd.f32 0.0, %v292
    %v294 = vpop.f32.mrb[0].mxu0
    %295 = vmatprep.mubr.f32.mxu0 0.0
    %296 = vmatmul.mubr.f32.gmra.mrb[0].mxu0 %v136
    %v297 = vpop.f32.mrb[0].mxu0
    %v298 = vadd.f32 0.0, %v297
    %v299 = vpop.f32.mrb[0].mxu0
    %300 = vmatprep.mubr.f32.mxu0 0.0
    %301 = vmatmul.mubr.f32.gmra.mrb[0].mxu0 %v139
    %v302 = vpop.f32.mrb[0].mxu0
    %v303 = vadd.f32 0.0, %v302
    %v304 = vpop.f32.mrb[0].mxu0
    %305 = vmatprep.mubr.f32.mxu0 0.0
    %306 = vmatmul.mubr.f32.gmra.mrb[0].mxu0 %v142
    %v307 = vpop.f32.mrb[0].mxu0
    %v308 = vadd.f32 0.0, %v307
    %v309 = vpop.f32.mrb[0].mxu0
    %310 = vmatprep.mubr.f32.mxu0 0.0
    %311 = vmatmul.mubr.f32.gmra.mrb[0].mxu0 %v145
    %v312 = vpop.f32.mrb[0].mxu0
    %v313 = vadd.f32 0.0, %v312
    %v314 = vpop.f32.mrb[0].mxu0
    %315 = vdwg.mxu0
    %v316 = vmul.f32 %v238, 2.0
    %v317 = vmul.f32 %v243, 2.0
    %v318 = vmul.f32 %v248, 2.0
    %v319 = vmul.f32 %v253, 2.0
    %v320 = vmul.f32 %v258, 2.0
    %v321 = vmul.f32 %v263, 2.0
    %v322 = vmul.f32 %v268, 2.0
    %v323 = vmul.f32 %v273, 2.0
    %v324 = vmul.f32 %v278, 2.0
    %v325 = vmul.f32 %v283, 2.0
    %v326 = vmul.f32 %v288, 2.0
    %v327 = vmul.f32 %v293, 2.0
    %v328 = vmul.f32 %v298, 2.0
    %v329 = vmul.f32 %v303, 2.0
    %v330 = vmul.f32 %v308, 2.0
    %v331 = vmul.f32 %v313, 2.0
    %v333 = vlaneseq
    %v334 = vshrl.u32 %v333, 7
    %v335 = vsub.s32 0, %v334
    %v336 = vrot.slane %v97, %v335
    %v338 = vsub.f32 %v336, %v316
    %v339 = vsub.f32 %v336, %v317
    %v340 = vsub.f32 %v336, %v318
    %v341 = vsub.f32 %v336, %v319
    %v342 = vsub.f32 %v336, %v320
    %v343 = vsub.f32 %v336, %v321
    %v344 = vsub.f32 %v336, %v322
    %v345 = vsub.f32 %v336, %v323
    %v346 = vsub.f32 %v336, %v324
    %v347 = vsub.f32 %v336, %v325
    %v348 = vsub.f32 %v336, %v326
    %v349 = vsub.f32 %v336, %v327
    %v350 = vsub.f32 %v336, %v328
    %v351 = vsub.f32 %v336, %v329
    %v352 = vsub.f32 %v336, %v330
    %v353 = vsub.f32 %v336, %v331
    %vm354 = vcmask 523264
    %v355 = vsel %vm354, %v338, inf
    %356 = vmin.xlane.f32.xlu0 %v355
    %v357 = vpop.xlane.xlu0 %356
    %v358 = vsel %vm354, %v339, inf
    %359 = vmin.xlane.f32.xlu0 %v358
    %v360 = vpop.xlane.xlu0 %359
    %v361 = vsel %vm354, %v340, inf
    %362 = vmin.xlane.f32.xlu0 %v361
    %v363 = vpop.xlane.xlu0 %362
    %v364 = vsel %vm354, %v341, inf
    %365 = vmin.xlane.f32.xlu0 %v364
    %v366 = vpop.xlane.xlu0 %365
    %v367 = vsel %vm354, %v342, inf
    %368 = vmin.xlane.f32.xlu0 %v367
    %v369 = vpop.xlane.xlu0 %368
    %v370 = vsel %vm354, %v343, inf
    %371 = vmin.xlane.f32.xlu0 %v370
    %v372 = vpop.xlane.xlu0 %371
    %v373 = vsel %vm354, %v344, inf
    %374 = vmin.xlane.f32.xlu0 %v373
    %v375 = vpop.xlane.xlu0 %374
    %v376 = vsel %vm354, %v345, inf
    %377 = vmin.xlane.f32.xlu0 %v376
    %v378 = vpop.xlane.xlu0 %377
    %v379 = vsel %vm354, %v346, inf
    %380 = vmin.xlane.f32.xlu0 %v379
    %v381 = vpop.xlane.xlu0 %380
    %v382 = vsel %vm354, %v347, inf
    %383 = vmin.xlane.f32.xlu0 %v382
    %v384 = vpop.xlane.xlu0 %383
    %v385 = vsel %vm354, %v348, inf
    %386 = vmin.xlane.f32.xlu0 %v385
    %v387 = vpop.xlane.xlu0 %386
    %v388 = vsel %vm354, %v349, inf
    %389 = vmin.xlane.f32.xlu0 %v388
    %v390 = vpop.xlane.xlu0 %389
    %v391 = vsel %vm354, %v350, inf
    %392 = vmin.xlane.f32.xlu0 %v391
    %v393 = vpop.xlane.xlu0 %392
    %v394 = vsel %vm354, %v351, inf
    %395 = vmin.xlane.f32.xlu0 %v394
    %v396 = vpop.xlane.xlu0 %395
    %v397 = vsel %vm354, %v352, inf
    %398 = vmin.xlane.f32.xlu0 %v397
    %v399 = vpop.xlane.xlu0 %398
    %v400 = vsel %vm354, %v353, inf
    %401 = vmin.xlane.f32.xlu0 %v400
    %v402 = vpop.xlane.xlu0 %401
    %v403 = vlaneseq
    %v404 = vand.u32 %v403, 127
    %vm405 = vcmp.le.f32.partialorder %v338, %v357
    %vm406 = vcmp.le.f32.partialorder %v339, %v360
    %vm407 = vcmp.le.f32.partialorder %v340, %v363
    %vm408 = vcmp.le.f32.partialorder %v341, %v366
    %vm409 = vcmp.le.f32.partialorder %v342, %v369
    %vm410 = vcmp.le.f32.partialorder %v343, %v372
    %vm411 = vcmp.le.f32.partialorder %v344, %v375
    %vm412 = vcmp.le.f32.partialorder %v345, %v378
    %vm413 = vcmp.le.f32.partialorder %v346, %v381
    %vm414 = vcmp.le.f32.partialorder %v347, %v384
    %vm415 = vcmp.le.f32.partialorder %v348, %v387
    %vm416 = vcmp.le.f32.partialorder %v349, %v390
    %vm417 = vcmp.le.f32.partialorder %v350, %v393
    %vm418 = vcmp.le.f32.partialorder %v351, %v396
    %vm419 = vcmp.le.f32.partialorder %v352, %v399
    %vm420 = vcmp.le.f32.partialorder %v353, %v402
    %v421 = vsel %vm405, %v404, 64
    %v422 = vsel %vm406, %v404, 64
    %v423 = vsel %vm407, %v404, 64
    %v424 = vsel %vm408, %v404, 64
    %v425 = vsel %vm409, %v404, 64
    %v426 = vsel %vm410, %v404, 64
    %v427 = vsel %vm411, %v404, 64
    %v428 = vsel %vm412, %v404, 64
    %v429 = vsel %vm413, %v404, 64
    %v430 = vsel %vm414, %v404, 64
    %v431 = vsel %vm415, %v404, 64
    %v432 = vsel %vm416, %v404, 64
    %v433 = vsel %vm417, %v404, 64
    %v434 = vsel %vm418, %v404, 64
    %v435 = vsel %vm419, %v404, 64
    %v436 = vsel %vm420, %v404, 64
    %v437 = vsel %vm354, %v421, 2147483647
    %v438 = vand.u32 %v437, 65535
    %v439 = vshra.s32 %v437, 16
    %v440 = vcvt.s32.f32 %v438
    %v441 = vcvt.s32.f32 %v439
    %442 = vmin.xlane.f32.xlu0 %v441
    %v443 = vpop.xlane.xlu0 %442
    %vm444 = vcmp.eq.f32.partialorder %v441, %v443
    %v445 = vsel %vm444, %v440, inf
    %446 = vmin.xlane.f32.xlu0 %v445
    %v447 = vpop.xlane.xlu0 %446
    %v448 = vcvt.f32.s32 %v447
    %v449 = vcvt.f32.s32 %v443
    %v450 = vshll.u32 %v449, 16
    %v451 = vadd.s32 %v450, %v448
    %v452 = vsel %vm354, %v422, 2147483647
    %v453 = vand.u32 %v452, 65535
    %v454 = vshra.s32 %v452, 16
    %v455 = vcvt.s32.f32 %v453
    %v456 = vcvt.s32.f32 %v454
    %457 = vmin.xlane.f32.xlu0 %v456
    %v458 = vpop.xlane.xlu0 %457
    %vm459 = vcmp.eq.f32.partialorder %v456, %v458
    %v460 = vsel %vm459, %v455, inf
    %461 = vmin.xlane.f32.xlu0 %v460
    %v462 = vpop.xlane.xlu0 %461
    %v463 = vcvt.f32.s32 %v462
    %v464 = vcvt.f32.s32 %v458
    %v465 = vshll.u32 %v464, 16
    %v466 = vadd.s32 %v465, %v463
    %v467 = vsel %vm354, %v423, 2147483647
    %v468 = vand.u32 %v467, 65535
    %v469 = vshra.s32 %v467, 16
    %v470 = vcvt.s32.f32 %v468
    %v471 = vcvt.s32.f32 %v469
    %472 = vmin.xlane.f32.xlu0 %v471
    %v473 = vpop.xlane.xlu0 %472
    %vm474 = vcmp.eq.f32.partialorder %v471, %v473
    %v475 = vsel %vm474, %v470, inf
    %476 = vmin.xlane.f32.xlu0 %v475
    %v477 = vpop.xlane.xlu0 %476
    %v478 = vcvt.f32.s32 %v477
    %v479 = vcvt.f32.s32 %v473
    %v480 = vshll.u32 %v479, 16
    %v481 = vadd.s32 %v480, %v478
    %v482 = vsel %vm354, %v424, 2147483647
    %v483 = vand.u32 %v482, 65535
    %v484 = vshra.s32 %v482, 16
    %v485 = vcvt.s32.f32 %v483
    %v486 = vcvt.s32.f32 %v484
    %487 = vmin.xlane.f32.xlu0 %v486
    %v488 = vpop.xlane.xlu0 %487
    %vm489 = vcmp.eq.f32.partialorder %v486, %v488
    %v490 = vsel %vm489, %v485, inf
    %491 = vmin.xlane.f32.xlu0 %v490
    %v492 = vpop.xlane.xlu0 %491
    %v493 = vcvt.f32.s32 %v492
    %v494 = vcvt.f32.s32 %v488
    %v495 = vshll.u32 %v494, 16
    %v496 = vadd.s32 %v495, %v493
    %v497 = vsel %vm354, %v425, 2147483647
    %v498 = vand.u32 %v497, 65535
    %v499 = vshra.s32 %v497, 16
    %v500 = vcvt.s32.f32 %v498
    %v501 = vcvt.s32.f32 %v499
    %502 = vmin.xlane.f32.xlu0 %v501
    %v503 = vpop.xlane.xlu0 %502
    %vm504 = vcmp.eq.f32.partialorder %v501, %v503
    %v505 = vsel %vm504, %v500, inf
    %506 = vmin.xlane.f32.xlu0 %v505
    %v507 = vpop.xlane.xlu0 %506
    %v508 = vcvt.f32.s32 %v507
    %v509 = vcvt.f32.s32 %v503
    %v510 = vshll.u32 %v509, 16
    %v511 = vadd.s32 %v510, %v508
    %v512 = vsel %vm354, %v426, 2147483647
    %v513 = vand.u32 %v512, 65535
    %v514 = vshra.s32 %v512, 16
    %v515 = vcvt.s32.f32 %v513
    %v516 = vcvt.s32.f32 %v514
    %517 = vmin.xlane.f32.xlu0 %v516
    %v518 = vpop.xlane.xlu0 %517
    %vm519 = vcmp.eq.f32.partialorder %v516, %v518
    %v520 = vsel %vm519, %v515, inf
    %521 = vmin.xlane.f32.xlu0 %v520
    %v522 = vpop.xlane.xlu0 %521
    %v523 = vcvt.f32.s32 %v522
    %v524 = vcvt.f32.s32 %v518
    %v525 = vshll.u32 %v524, 16
    %v526 = vadd.s32 %v525, %v523
    %v527 = vsel %vm354, %v427, 2147483647
    %v528 = vand.u32 %v527, 65535
    %v529 = vshra.s32 %v527, 16
    %v530 = vcvt.s32.f32 %v528
    %v531 = vcvt.s32.f32 %v529
    %532 = vmin.xlane.f32.xlu0 %v531
    %v533 = vpop.xlane.xlu0 %532
    %vm534 = vcmp.eq.f32.partialorder %v531, %v533
    %v535 = vsel %vm534, %v530, inf
    %536 = vmin.xlane.f32.xlu0 %v535
    %v537 = vpop.xlane.xlu0 %536
    %v538 = vcvt.f32.s32 %v537
    %v539 = vcvt.f32.s32 %v533
    %v540 = vshll.u32 %v539, 16
    %v541 = vadd.s32 %v540, %v538
    %v542 = vsel %vm354, %v428, 2147483647
    %v543 = vand.u32 %v542, 65535
    %v544 = vshra.s32 %v542, 16
    %v545 = vcvt.s32.f32 %v543
    %v546 = vcvt.s32.f32 %v544
    %547 = vmin.xlane.f32.xlu0 %v546
    %v548 = vpop.xlane.xlu0 %547
    %vm549 = vcmp.eq.f32.partialorder %v546, %v548
    %v550 = vsel %vm549, %v545, inf
    %551 = vmin.xlane.f32.xlu0 %v550
    %v552 = vpop.xlane.xlu0 %551
    %v553 = vcvt.f32.s32 %v552
    %v554 = vcvt.f32.s32 %v548
    %v555 = vshll.u32 %v554, 16
    %v556 = vadd.s32 %v555, %v553
    %v557 = vsel %vm354, %v429, 2147483647
    %v558 = vand.u32 %v557, 65535
    %v559 = vshra.s32 %v557, 16
    %v560 = vcvt.s32.f32 %v558
    %v561 = vcvt.s32.f32 %v559
    %562 = vmin.xlane.f32.xlu0 %v561
    %v563 = vpop.xlane.xlu0 %562
    %vm564 = vcmp.eq.f32.partialorder %v561, %v563
    %v565 = vsel %vm564, %v560, inf
    %566 = vmin.xlane.f32.xlu0 %v565
    %v567 = vpop.xlane.xlu0 %566
    %v568 = vcvt.f32.s32 %v567
    %v569 = vcvt.f32.s32 %v563
    %v570 = vshll.u32 %v569, 16
    %v571 = vadd.s32 %v570, %v568
    %v572 = vsel %vm354, %v430, 2147483647
    %v573 = vand.u32 %v572, 65535
    %v574 = vshra.s32 %v572, 16
    %v575 = vcvt.s32.f32 %v573
    %v576 = vcvt.s32.f32 %v574
    %577 = vmin.xlane.f32.xlu0 %v576
    %v578 = vpop.xlane.xlu0 %577
    %vm579 = vcmp.eq.f32.partialorder %v576, %v578
    %v580 = vsel %vm579, %v575, inf
    %581 = vmin.xlane.f32.xlu0 %v580
    %v582 = vpop.xlane.xlu0 %581
    %v583 = vcvt.f32.s32 %v582
    %v584 = vcvt.f32.s32 %v578
    %v585 = vshll.u32 %v584, 16
    %v586 = vadd.s32 %v585, %v583
    %v587 = vsel %vm354, %v431, 2147483647
    %v588 = vand.u32 %v587, 65535
    %v589 = vshra.s32 %v587, 16
    %v590 = vcvt.s32.f32 %v588
    %v591 = vcvt.s32.f32 %v589
    %592 = vmin.xlane.f32.xlu0 %v591
    %v593 = vpop.xlane.xlu0 %592
    %vm594 = vcmp.eq.f32.partialorder %v591, %v593
    %v595 = vsel %vm594, %v590, inf
    %596 = vmin.xlane.f32.xlu0 %v595
    %v597 = vpop.xlane.xlu0 %596
    %v598 = vcvt.f32.s32 %v597
    %v599 = vcvt.f32.s32 %v593
    %v600 = vshll.u32 %v599, 16
    %v601 = vadd.s32 %v600, %v598
    %v602 = vsel %vm354, %v432, 2147483647
    %v603 = vand.u32 %v602, 65535
    %v604 = vshra.s32 %v602, 16
    %v605 = vcvt.s32.f32 %v603
    %v606 = vcvt.s32.f32 %v604
    %607 = vmin.xlane.f32.xlu0 %v606
    %v608 = vpop.xlane.xlu0 %607
    %vm609 = vcmp.eq.f32.partialorder %v606, %v608
    %v610 = vsel %vm609, %v605, inf
    %611 = vmin.xlane.f32.xlu0 %v610
    %v612 = vpop.xlane.xlu0 %611
    %v613 = vcvt.f32.s32 %v612
    %v614 = vcvt.f32.s32 %v608
    %v615 = vshll.u32 %v614, 16
    %v616 = vadd.s32 %v615, %v613
    %v617 = vsel %vm354, %v433, 2147483647
    %v618 = vand.u32 %v617, 65535
    %v619 = vshra.s32 %v617, 16
    %v620 = vcvt.s32.f32 %v618
    %v621 = vcvt.s32.f32 %v619
    %622 = vmin.xlane.f32.xlu0 %v621
    %v623 = vpop.xlane.xlu0 %622
    %vm624 = vcmp.eq.f32.partialorder %v621, %v623
    %v625 = vsel %vm624, %v620, inf
    %626 = vmin.xlane.f32.xlu0 %v625
    %v627 = vpop.xlane.xlu0 %626
    %v628 = vcvt.f32.s32 %v627
    %v629 = vcvt.f32.s32 %v623
    %v630 = vshll.u32 %v629, 16
    %v631 = vadd.s32 %v630, %v628
    %v632 = vsel %vm354, %v434, 2147483647
    %v633 = vand.u32 %v632, 65535
    %v634 = vshra.s32 %v632, 16
    %v635 = vcvt.s32.f32 %v633
    %v636 = vcvt.s32.f32 %v634
    %637 = vmin.xlane.f32.xlu0 %v636
    %v638 = vpop.xlane.xlu0 %637
    %vm639 = vcmp.eq.f32.partialorder %v636, %v638
    %v640 = vsel %vm639, %v635, inf
    %641 = vmin.xlane.f32.xlu0 %v640
    %v642 = vpop.xlane.xlu0 %641
    %v643 = vcvt.f32.s32 %v642
    %v644 = vcvt.f32.s32 %v638
    %v645 = vshll.u32 %v644, 16
    %v646 = vadd.s32 %v645, %v643
    %v647 = vsel %vm354, %v435, 2147483647
    %v648 = vand.u32 %v647, 65535
    %v649 = vshra.s32 %v647, 16
    %v650 = vcvt.s32.f32 %v648
    %v651 = vcvt.s32.f32 %v649
    %652 = vmin.xlane.f32.xlu0 %v651
    %v653 = vpop.xlane.xlu0 %652
    %vm654 = vcmp.eq.f32.partialorder %v651, %v653
    %v655 = vsel %vm654, %v650, inf
    %656 = vmin.xlane.f32.xlu0 %v655
    %v657 = vpop.xlane.xlu0 %656
    %v658 = vcvt.f32.s32 %v657
    %v659 = vcvt.f32.s32 %v653
    %v660 = vshll.u32 %v659, 16
    %v661 = vadd.s32 %v660, %v658
    %v662 = vsel %vm354, %v436, 2147483647
    %v663 = vand.u32 %v662, 65535
    %v664 = vshra.s32 %v662, 16
    %v665 = vcvt.s32.f32 %v663
    %v666 = vcvt.s32.f32 %v664
    %667 = vmin.xlane.f32.xlu0 %v666
    %v668 = vpop.xlane.xlu0 %667
    %vm669 = vcmp.eq.f32.partialorder %v666, %v668
    %v670 = vsel %vm669, %v665, inf
    %671 = vmin.xlane.f32.xlu0 %v670
    %v672 = vpop.xlane.xlu0 %671
    %v673 = vcvt.f32.s32 %v672
    %v674 = vcvt.f32.s32 %v668
    %v675 = vshll.u32 %v674, 16
    %v676 = vadd.s32 %v675, %v673
    %vm677 = vcmp.eq.s32.totalorder %v404, %v451
    %vm678 = vcmp.eq.s32.totalorder %v404, %v466
    %vm679 = vcmp.eq.s32.totalorder %v404, %v481
    %vm680 = vcmp.eq.s32.totalorder %v404, %v496
    %vm681 = vcmp.eq.s32.totalorder %v404, %v511
    %vm682 = vcmp.eq.s32.totalorder %v404, %v526
    %vm683 = vcmp.eq.s32.totalorder %v404, %v541
    %vm684 = vcmp.eq.s32.totalorder %v404, %v556
    %vm685 = vcmp.eq.s32.totalorder %v404, %v571
    %vm686 = vcmp.eq.s32.totalorder %v404, %v586
    %vm687 = vcmp.eq.s32.totalorder %v404, %v601
    %vm688 = vcmp.eq.s32.totalorder %v404, %v616
    %vm689 = vcmp.eq.s32.totalorder %v404, %v631
    %vm690 = vcmp.eq.s32.totalorder %v404, %v646
    %vm691 = vcmp.eq.s32.totalorder %v404, %v661
    %vm692 = vcmp.eq.s32.totalorder %v404, %v676
    %v693 = vsel %vm677, 1, 0
    %v694 = vsel %vm678, 1, 0
    %v695 = vsel %vm679, 1, 0
    %v696 = vsel %vm680, 1, 0
    %v697 = vsel %vm681, 1, 0
    %v698 = vsel %vm682, 1, 0
    %v699 = vsel %vm683, 1, 0
    %v700 = vsel %vm684, 1, 0
    %v701 = vsel %vm685, 1, 0
    %v702 = vsel %vm686, 1, 0
    %v703 = vsel %vm687, 1, 0
    %v704 = vsel %vm688, 1, 0
    %v705 = vsel %vm689, 1, 0
    %v706 = vsel %vm690, 1, 0
    %v707 = vsel %vm691, 1, 0
    %v708 = vsel %vm692, 1, 0
    %v709 = vcvt.s32.f32 %v693
    %v710 = vcvt.s32.f32 %v694
    %v711 = vcvt.s32.f32 %v695
    %v712 = vcvt.s32.f32 %v696
    %v713 = vcvt.s32.f32 %v697
    %v714 = vcvt.s32.f32 %v698
    %v715 = vcvt.s32.f32 %v699
    %v716 = vcvt.s32.f32 %v700
    %v717 = vcvt.s32.f32 %v701
    %v718 = vcvt.s32.f32 %v702
    %v719 = vcvt.s32.f32 %v703
    %v720 = vcvt.s32.f32 %v704
    %v721 = vcvt.s32.f32 %v705
    %v722 = vcvt.s32.f32 %v706
    %v723 = vcvt.s32.f32 %v707
    %v724 = vcvt.s32.f32 %v708
    %v726 = vsel %vm354, %v709, 0
    %v729 = vsel %vm354, %v710, 0
    %v732 = vsel %vm354, %v711, 0
    %v735 = vsel %vm354, %v712, 0
    %v738 = vsel %vm354, %v713, 0
    %v741 = vsel %vm354, %v714, 0
    %v744 = vsel %vm354, %v715, 0
    %v747 = vsel %vm354, %v716, 0
    %v750 = vsel %vm354, %v717, 0
    %v753 = vsel %vm354, %v718, 0
    %v756 = vsel %vm354, %v719, 0
    %v759 = vsel %vm354, %v720, 0
    %v762 = vsel %vm354, %v721, 0
    %v765 = vsel %vm354, %v722, 0
    %v768 = vsel %vm354, %v723, 0
    %v771 = vsel %vm354, %v724, 0
    %773 = vmatprep.subr.mxu0 0.0
    %774 = vmatpush1.msra.mxu0 %v89
    %775 = vmatprep.subr.mxu0 0.0
    %776 = vmatpush1.msra.mxu0 %v90
    %777 = vmatprep.subr.mxu0 0.0
    %778 = vmatpush1.msra.mxu0 %v91
    %779 = vmatprep.subr.mxu0 0.0
    %780 = vmatpush1.msra.mxu0 %v92
    %781 = vmatprep.subr.mxu0 0.0
    %782 = vmatpush1.msra.mxu0 %v93
    %783 = vmatprep.subr.mxu0 0.0
    %784 = vmatpush1.msra.mxu0 %v94
    %785 = vmatprep.subr.mxu0 0.0
    %786 = vmatpush1.msra.mxu0 %v95
    %787 = vmatprep.subr.mxu0 0.0
    %788 = vmatpush1.msra.mxu0 %v96
    %789 = vmatprep.subr.mxu0 0.0
    %790 = vmatpush1.msra.mxu0 0.0
    %791 = vmatprep.subr.mxu0 0.0
    %792 = vmatpush1.msra.mxu0 0.0
    %793 = vmatprep.subr.mxu0 0.0
    %794 = vmatpush1.msra.mxu0 0.0
    %795 = vmatprep.subr.mxu0 0.0
    %796 = vmatpush1.msra.mxu0 0.0
    %797 = vmatprep.subr.mxu0 0.0
    %798 = vmatpush1.msra.mxu0 0.0
    %799 = vmatprep.subr.mxu0 0.0
    %800 = vmatpush1.msra.mxu0 0.0
    %801 = vmatprep.subr.mxu0 0.0
    %802 = vmatpush1.msra.mxu0 0.0
    %803 = vmatprep.subr.mxu0 0.0
    %804 = vmatpush1.msra.mxu0 0.0
    %805 = vmatprep.subr.mxu0 0.0
    %806 = vmatpush1.msra.mxu0 0.0
    %807 = vmatprep.subr.mxu0 0.0
    %808 = vmatpush1.msra.mxu0 0.0
    %809 = vmatprep.subr.mxu0 0.0
    %810 = vmatpush1.msra.mxu0 0.0
    %811 = vmatprep.subr.mxu0 0.0
    %812 = vmatpush1.msra.mxu0 0.0
    %813 = vmatprep.subr.mxu0 0.0
    %814 = vmatpush1.msra.mxu0 0.0
    %815 = vmatprep.subr.mxu0 0.0
    %816 = vmatpush1.msra.mxu0 0.0
    %817 = vmatprep.subr.mxu0 0.0
    %818 = vmatpush1.msra.mxu0 0.0
    %819 = vmatprep.subr.mxu0 0.0
    %820 = vmatpush1.msra.mxu0 0.0
    %821 = vmatprep.subr.mxu0 0.0
    %822 = vmatpush1.msra.mxu0 0.0
    %823 = vmatprep.subr.mxu0 0.0
    %824 = vmatpush1.msra.mxu0 0.0
    %825 = vmatprep.subr.mxu0 0.0
    %826 = vmatpush1.msra.mxu0 0.0
    %827 = vmatprep.subr.mxu0 0.0
    %828 = vmatpush1.msra.mxu0 0.0
    %829 = vmatprep.subr.mxu0 0.0
    %830 = vmatpush1.msra.mxu0 0.0
    %831 = vmatprep.subr.mxu0 0.0
    %832 = vmatpush1.msra.mxu0 0.0
    %833 = vmatprep.subr.mxu0 0.0
    %834 = vmatpush1.msra.mxu0 0.0
    %835 = vmatprep.subr.mxu0 0.0
    %836 = vmatpush1.msra.mxu0 0.0
    %837 = vmatprep.mubr.f32.mxu0 0.0
    %838 = vmatmul.mubr.f32.gmra.mrb[0].mxu0 %v726
    %v839 = vpop.f32.mrb[0].mxu0
    %v840 = vadd.f32 0.0, %v839
    %v841 = vpop.f32.mrb[0].mxu0
    %842 = vmatprep.mubr.f32.mxu0 0.0
    %843 = vmatmul.mubr.f32.gmra.mrb[0].mxu0 %v729
    %v844 = vpop.f32.mrb[0].mxu0
    %v845 = vadd.f32 0.0, %v844
    %v846 = vpop.f32.mrb[0].mxu0
    %847 = vmatprep.mubr.f32.mxu0 0.0
    %848 = vmatmul.mubr.f32.gmra.mrb[0].mxu0 %v732
    %v849 = vpop.f32.mrb[0].mxu0
    %v850 = vadd.f32 0.0, %v849
    %v851 = vpop.f32.mrb[0].mxu0
    %852 = vmatprep.mubr.f32.mxu0 0.0
    %853 = vmatmul.mubr.f32.gmra.mrb[0].mxu0 %v735
    %v854 = vpop.f32.mrb[0].mxu0
    %v855 = vadd.f32 0.0, %v854
    %v856 = vpop.f32.mrb[0].mxu0
    %857 = vmatprep.mubr.f32.mxu0 0.0
    %858 = vmatmul.mubr.f32.gmra.mrb[0].mxu0 %v738
    %v859 = vpop.f32.mrb[0].mxu0
    %v860 = vadd.f32 0.0, %v859
    %v861 = vpop.f32.mrb[0].mxu0
    %862 = vmatprep.mubr.f32.mxu0 0.0
    %863 = vmatmul.mubr.f32.gmra.mrb[0].mxu0 %v741
    %v864 = vpop.f32.mrb[0].mxu0
    %v865 = vadd.f32 0.0, %v864
    %v866 = vpop.f32.mrb[0].mxu0
    %867 = vmatprep.mubr.f32.mxu0 0.0
    %868 = vmatmul.mubr.f32.gmra.mrb[0].mxu0 %v744
    %v869 = vpop.f32.mrb[0].mxu0
    %v870 = vadd.f32 0.0, %v869
    %v871 = vpop.f32.mrb[0].mxu0
    %872 = vmatprep.mubr.f32.mxu0 0.0
    %873 = vmatmul.mubr.f32.gmra.mrb[0].mxu0 %v747
    %v874 = vpop.f32.mrb[0].mxu0
    %v875 = vadd.f32 0.0, %v874
    %v876 = vpop.f32.mrb[0].mxu0
    %877 = vmatprep.mubr.f32.mxu0 0.0
    %878 = vmatmul.mubr.f32.gmra.mrb[0].mxu0 %v750
    %v879 = vpop.f32.mrb[0].mxu0
    %v880 = vadd.f32 0.0, %v879
    %v881 = vpop.f32.mrb[0].mxu0
    %882 = vmatprep.mubr.f32.mxu0 0.0
    %883 = vmatmul.mubr.f32.gmra.mrb[0].mxu0 %v753
    %v884 = vpop.f32.mrb[0].mxu0
    %v885 = vadd.f32 0.0, %v884
    %v886 = vpop.f32.mrb[0].mxu0
    %887 = vmatprep.mubr.f32.mxu0 0.0
    %888 = vmatmul.mubr.f32.gmra.mrb[0].mxu0 %v756
    %v889 = vpop.f32.mrb[0].mxu0
    %v890 = vadd.f32 0.0, %v889
    %v891 = vpop.f32.mrb[0].mxu0
    %892 = vmatprep.mubr.f32.mxu0 0.0
    %893 = vmatmul.mubr.f32.gmra.mrb[0].mxu0 %v759
    %v894 = vpop.f32.mrb[0].mxu0
    %v895 = vadd.f32 0.0, %v894
    %v896 = vpop.f32.mrb[0].mxu0
    %897 = vmatprep.mubr.f32.mxu0 0.0
    %898 = vmatmul.mubr.f32.gmra.mrb[0].mxu0 %v762
    %v899 = vpop.f32.mrb[0].mxu0
    %v900 = vadd.f32 0.0, %v899
    %v901 = vpop.f32.mrb[0].mxu0
    %902 = vmatprep.mubr.f32.mxu0 0.0
    %903 = vmatmul.mubr.f32.gmra.mrb[0].mxu0 %v765
    %v904 = vpop.f32.mrb[0].mxu0
    %v905 = vadd.f32 0.0, %v904
    %v906 = vpop.f32.mrb[0].mxu0
    %907 = vmatprep.mubr.f32.mxu0 0.0
    %908 = vmatmul.mubr.f32.gmra.mrb[0].mxu0 %v768
    %v909 = vpop.f32.mrb[0].mxu0
    %v910 = vadd.f32 0.0, %v909
    %v911 = vpop.f32.mrb[0].mxu0
    %912 = vmatprep.mubr.f32.mxu0 0.0
    %913 = vmatmul.mubr.f32.gmra.mrb[0].mxu0 %v771
    %v914 = vpop.f32.mrb[0].mxu0
    %v915 = vadd.f32 0.0, %v914
    %v916 = vpop.f32.mrb[0].mxu0
    %917 = vdwg.mxu0
    %v918 = vld [vmem:[#allocation2] sm:$0xff]
    %v919 = vld [vmem:[#allocation2 + $0x8] sm:$0xff]
    %v920 = vld [vmem:[#allocation2 + $0x10] sm:$0xff]
    %v921 = vld [vmem:[#allocation2 + $0x18] sm:$0xff]
    %v922 = vld [vmem:[#allocation2 + $0x20] sm:$0xff]
    %v923 = vld [vmem:[#allocation2 + $0x28] sm:$0xff]
    %v924 = vld [vmem:[#allocation2 + $0x30] sm:$0xff]
    %v925 = vld [vmem:[#allocation2 + $0x38] sm:$0xff]
    %v926 = vld [vmem:[#allocation2 + $0x40] sm:$0xff]
    %v927 = vld [vmem:[#allocation2 + $0x48] sm:$0xff]
    %v928 = vld [vmem:[#allocation2 + $0x50] sm:$0xff]
    %v929 = vld [vmem:[#allocation2 + $0x58] sm:$0xff]
    %v930 = vld [vmem:[#allocation2 + $0x60] sm:$0xff]
    %v931 = vld [vmem:[#allocation2 + $0x68] sm:$0xff]
    %v932 = vld [vmem:[#allocation2 + $0x70] sm:$0xff]
    %v933 = vld [vmem:[#allocation2 + $0x78] sm:$0xff]
    %vm934 = vcmp.lt.f32.partialorder %v357, %v918
    %vm935 = vcmp.lt.f32.partialorder %v360, %v919
    %vm936 = vcmp.lt.f32.partialorder %v363, %v920
    %vm937 = vcmp.lt.f32.partialorder %v366, %v921
    %vm938 = vcmp.lt.f32.partialorder %v369, %v922
    %vm939 = vcmp.lt.f32.partialorder %v372, %v923
    %vm940 = vcmp.lt.f32.partialorder %v375, %v924
    %vm941 = vcmp.lt.f32.partialorder %v378, %v925
    %vm942 = vcmp.lt.f32.partialorder %v381, %v926
    %vm943 = vcmp.lt.f32.partialorder %v384, %v927
    %vm944 = vcmp.lt.f32.partialorder %v387, %v928
    %vm945 = vcmp.lt.f32.partialorder %v390, %v929
    %vm946 = vcmp.lt.f32.partialorder %v393, %v930
    %vm947 = vcmp.lt.f32.partialorder %v396, %v931
    %vm948 = vcmp.lt.f32.partialorder %v399, %v932
    %vm949 = vcmp.lt.f32.partialorder %v402, %v933
    %v950 = vsel %vm934, %v357, %v918
    %v951 = vsel %vm935, %v360, %v919
    %v952 = vsel %vm936, %v363, %v920
    %v953 = vsel %vm937, %v366, %v921
    %v954 = vsel %vm938, %v369, %v922
    %v955 = vsel %vm939, %v372, %v923
    %v956 = vsel %vm940, %v375, %v924
    %v957 = vsel %vm941, %v378, %v925
    %v958 = vsel %vm942, %v381, %v926
    %v959 = vsel %vm943, %v384, %v927
    %v960 = vsel %vm944, %v387, %v928
    %v961 = vsel %vm945, %v390, %v929
    %v962 = vsel %vm946, %v393, %v930
    %v963 = vsel %vm947, %v396, %v931
    %v964 = vsel %vm948, %v399, %v932
    %v965 = vsel %vm949, %v402, %v933
    %vm966 = vcmask 7168
    %967 = vst.msk [vmem:[#allocation2] sm:$0xff] %vm966, %v950
    %968 = vst.msk [vmem:[#allocation2 + $0x8] sm:$0xff] %vm966, %v951
    %969 = vst.msk [vmem:[#allocation2 + $0x10] sm:$0xff] %vm966, %v952
    %970 = vst.msk [vmem:[#allocation2 + $0x18] sm:$0xff] %vm966, %v953
    %971 = vst.msk [vmem:[#allocation2 + $0x20] sm:$0xff] %vm966, %v954
    %972 = vst.msk [vmem:[#allocation2 + $0x28] sm:$0xff] %vm966, %v955
    %973 = vst.msk [vmem:[#allocation2 + $0x30] sm:$0xff] %vm966, %v956
    %974 = vst.msk [vmem:[#allocation2 + $0x38] sm:$0xff] %vm966, %v957
    %975 = vst.msk [vmem:[#allocation2 + $0x40] sm:$0xff] %vm966, %v958
    %976 = vst.msk [vmem:[#allocation2 + $0x48] sm:$0xff] %vm966, %v959
    %977 = vst.msk [vmem:[#allocation2 + $0x50] sm:$0xff] %vm966, %v960
    %978 = vst.msk [vmem:[#allocation2 + $0x58] sm:$0xff] %vm966, %v961
    %979 = vst.msk [vmem:[#allocation2 + $0x60] sm:$0xff] %vm966, %v962
    %980 = vst.msk [vmem:[#allocation2 + $0x68] sm:$0xff] %vm966, %v963
    %981 = vst.msk [vmem:[#allocation2 + $0x70] sm:$0xff] %vm966, %v964
    %982 = vst.msk [vmem:[#allocation2 + $0x78] sm:$0xff] %vm966, %v965
    %s983 = smul.u32 0, 64
    %v984 = vstv %s983
    %v985 = vadd.s32 %v451, %v984
    %v986 = vadd.s32 %v466, %v984
    %v987 = vadd.s32 %v481, %v984
    %v988 = vadd.s32 %v496, %v984
    %v989 = vadd.s32 %v511, %v984
    %v990 = vadd.s32 %v526, %v984
    %v991 = vadd.s32 %v541, %v984
    %v992 = vadd.s32 %v556, %v984
    %v993 = vadd.s32 %v571, %v984
    %v994 = vadd.s32 %v586, %v984
    %v995 = vadd.s32 %v601, %v984
    %v996 = vadd.s32 %v616, %v984
    %v997 = vadd.s32 %v631, %v984
    %v998 = vadd.s32 %v646, %v984
    %v999 = vadd.s32 %v661, %v984
    %v1000 = vadd.s32 %v676, %v984
    %v1001 = vld [vmem:[#allocation3] sm:$0xff]
    %v1002 = vld [vmem:[#allocation3 + $0x8] sm:$0xff]
    %v1003 = vld [vmem:[#allocation3 + $0x10] sm:$0xff]
    %v1004 = vld [vmem:[#allocation3 + $0x18] sm:$0xff]
    %v1005 = vld [vmem:[#allocation3 + $0x20] sm:$0xff]
    %v1006 = vld [vmem:[#allocation3 + $0x28] sm:$0xff]
    %v1007 = vld [vmem:[#allocation3 + $0x30] sm:$0xff]
    %v1008 = vld [vmem:[#allocation3 + $0x38] sm:$0xff]
    %v1009 = vld [vmem:[#allocation3 + $0x40] sm:$0xff]
    %v1010 = vld [vmem:[#allocation3 + $0x48] sm:$0xff]
    %v1011 = vld [vmem:[#allocation3 + $0x50] sm:$0xff]
    %v1012 = vld [vmem:[#allocation3 + $0x58] sm:$0xff]
    %v1013 = vld [vmem:[#allocation3 + $0x60] sm:$0xff]
    %v1014 = vld [vmem:[#allocation3 + $0x68] sm:$0xff]
    %v1015 = vld [vmem:[#allocation3 + $0x70] sm:$0xff]
    %v1016 = vld [vmem:[#allocation3 + $0x78] sm:$0xff]
    %v1017 = vsel %vm934, %v985, %v1001
    %v1018 = vsel %vm935, %v986, %v1002
    %v1019 = vsel %vm936, %v987, %v1003
    %v1020 = vsel %vm937, %v988, %v1004
    %v1021 = vsel %vm938, %v989, %v1005
    %v1022 = vsel %vm939, %v990, %v1006
    %v1023 = vsel %vm940, %v991, %v1007
    %v1024 = vsel %vm941, %v992, %v1008
    %v1025 = vsel %vm942, %v993, %v1009
    %v1026 = vsel %vm943, %v994, %v1010
    %v1027 = vsel %vm944, %v995, %v1011
    %v1028 = vsel %vm945, %v996, %v1012
    %v1029 = vsel %vm946, %v997, %v1013
    %v1030 = vsel %vm947, %v998, %v1014
    %v1031 = vsel %vm948, %v999, %v1015
    %v1032 = vsel %vm949, %v1000, %v1016
    %1033 = vst.msk [vmem:[#allocation3] sm:$0xff] %vm966, %v1017
    %1034 = vst.msk [vmem:[#allocation3 + $0x8] sm:$0xff] %vm966, %v1018
    %1035 = vst.msk [vmem:[#allocation3 + $0x10] sm:$0xff] %vm966, %v1019
    %1036 = vst.msk [vmem:[#allocation3 + $0x18] sm:$0xff] %vm966, %v1020
    %1037 = vst.msk [vmem:[#allocation3 + $0x20] sm:$0xff] %vm966, %v1021
    %1038 = vst.msk [vmem:[#allocation3 + $0x28] sm:$0xff] %vm966, %v1022
    %1039 = vst.msk [vmem:[#allocation3 + $0x30] sm:$0xff] %vm966, %v1023
    %1040 = vst.msk [vmem:[#allocation3 + $0x38] sm:$0xff] %vm966, %v1024
    %1041 = vst.msk [vmem:[#allocation3 + $0x40] sm:$0xff] %vm966, %v1025
    %1042 = vst.msk [vmem:[#allocation3 + $0x48] sm:$0xff] %vm966, %v1026
    %1043 = vst.msk [vmem:[#allocation3 + $0x50] sm:$0xff] %vm966, %v1027
    %1044 = vst.msk [vmem:[#allocation3 + $0x58] sm:$0xff] %vm966, %v1028
    %1045 = vst.msk [vmem:[#allocation3 + $0x60] sm:$0xff] %vm966, %v1029
    %1046 = vst.msk [vmem:[#allocation3 + $0x68] sm:$0xff] %vm966, %v1030
    %1047 = vst.msk [vmem:[#allocation3 + $0x70] sm:$0xff] %vm966, %v1031
    %1048 = vst.msk [vmem:[#allocation3 + $0x78] sm:$0xff] %vm966, %v1032
    %v1049 = vld [vmem:[#allocation4] sm:$0xff]
    %v1050 = vld [vmem:[#allocation4 + $0x8] sm:$0xff]
    %v1051 = vld [vmem:[#allocation4 + $0x10] sm:$0xff]
    %v1052 = vld [vmem:[#allocation4 + $0x18] sm:$0xff]
    %v1053 = vld [vmem:[#allocation4 + $0x20] sm:$0xff]
    %v1054 = vld [vmem:[#allocation4 + $0x28] sm:$0xff]
    %v1055 = vld [vmem:[#allocation4 + $0x30] sm:$0xff]
    %v1056 = vld [vmem:[#allocation4 + $0x38] sm:$0xff]
    %v1057 = vld [vmem:[#allocation4 + $0x40] sm:$0xff]
    %v1058 = vld [vmem:[#allocation4 + $0x48] sm:$0xff]
    %v1059 = vld [vmem:[#allocation4 + $0x50] sm:$0xff]
    %v1060 = vld [vmem:[#allocation4 + $0x58] sm:$0xff]
    %v1061 = vld [vmem:[#allocation4 + $0x60] sm:$0xff]
    %v1062 = vld [vmem:[#allocation4 + $0x68] sm:$0xff]
    %v1063 = vld [vmem:[#allocation4 + $0x70] sm:$0xff]
    %v1064 = vld [vmem:[#allocation4 + $0x78] sm:$0xff]
    %v1065 = vsel %vm934, 1, 0
    %v1066 = vsel %vm935, 1, 0
    %v1067 = vsel %vm936, 1, 0
    %v1068 = vsel %vm937, 1, 0
    %v1069 = vsel %vm938, 1, 0
    %v1070 = vsel %vm939, 1, 0
    %v1071 = vsel %vm940, 1, 0
    %v1072 = vsel %vm941, 1, 0
    %v1073 = vsel %vm942, 1, 0
    %v1074 = vsel %vm943, 1, 0
    %v1075 = vsel %vm944, 1, 0
    %v1076 = vsel %vm945, 1, 0
    %v1077 = vsel %vm946, 1, 0
    %v1078 = vsel %vm947, 1, 0
    %v1079 = vsel %vm948, 1, 0
    %v1080 = vsel %vm949, 1, 0
    %1081 = vset.pattern.permute.xlu0 0
    %1082 = vperm.xlu0 %1081, %v1065
    %v1083 = vpop.permute.xlu0 %1082
    %1084 = vset.pattern.permute.xlu0 0
    %1085 = vperm.xlu0 %1084, %v1066
    %v1086 = vpop.permute.xlu0 %1085
    %1087 = vset.pattern.permute.xlu0 0
    %1088 = vperm.xlu0 %1087, %v1067
    %v1089 = vpop.permute.xlu0 %1088
    %1090 = vset.pattern.permute.xlu0 0
    %1091 = vperm.xlu0 %1090, %v1068
    %v1092 = vpop.permute.xlu0 %1091
    %1093 = vset.pattern.permute.xlu0 0
    %1094 = vperm.xlu0 %1093, %v1069
    %v1095 = vpop.permute.xlu0 %1094
    %1096 = vset.pattern.permute.xlu0 0
    %1097 = vperm.xlu0 %1096, %v1070
    %v1098 = vpop.permute.xlu0 %1097
    %1099 = vset.pattern.permute.xlu0 0
    %1100 = vperm.xlu0 %1099, %v1071
    %v1101 = vpop.permute.xlu0 %1100
    %1102 = vset.pattern.permute.xlu0 0
    %1103 = vperm.xlu0 %1102, %v1072
    %v1104 = vpop.permute.xlu0 %1103
    %1105 = vset.pattern.permute.xlu0 0
    %1106 = vperm.xlu0 %1105, %v1073
    %v1107 = vpop.permute.xlu0 %1106
    %1108 = vset.pattern.permute.xlu0 0
    %1109 = vperm.xlu0 %1108, %v1074
    %v1110 = vpop.permute.xlu0 %1109
    %1111 = vset.pattern.permute.xlu0 0
    %1112 = vperm.xlu0 %1111, %v1075
    %v1113 = vpop.permute.xlu0 %1112
    %1114 = vset.pattern.permute.xlu0 0
    %1115 = vperm.xlu0 %1114, %v1076
    %v1116 = vpop.permute.xlu0 %1115
    %1117 = vset.pattern.permute.xlu0 0
    %1118 = vperm.xlu0 %1117, %v1077
    %v1119 = vpop.permute.xlu0 %1118
    %1120 = vset.pattern.permute.xlu0 0
    %1121 = vperm.xlu0 %1120, %v1078
    %v1122 = vpop.permute.xlu0 %1121
    %1123 = vset.pattern.permute.xlu0 0
    %1124 = vperm.xlu0 %1123, %v1079
    %v1125 = vpop.permute.xlu0 %1124
    %1126 = vset.pattern.permute.xlu0 0
    %1127 = vperm.xlu0 %1126, %v1080
    %v1128 = vpop.permute.xlu0 %1127
    %vm1129 = vcmp.eq.s32.totalorder %v1083, 1
    %vm1130 = vcmp.eq.s32.totalorder %v1086, 1
    %vm1131 = vcmp.eq.s32.totalorder %v1089, 1
    %vm1132 = vcmp.eq.s32.totalorder %v1092, 1
    %vm1133 = vcmp.eq.s32.totalorder %v1095, 1
    %vm1134 = vcmp.eq.s32.totalorder %v1098, 1
    %vm1135 = vcmp.eq.s32.totalorder %v1101, 1
    %vm1136 = vcmp.eq.s32.totalorder %v1104, 1
    %vm1137 = vcmp.eq.s32.totalorder %v1107, 1
    %vm1138 = vcmp.eq.s32.totalorder %v1110, 1
    %vm1139 = vcmp.eq.s32.totalorder %v1113, 1
    %vm1140 = vcmp.eq.s32.totalorder %v1116, 1
    %vm1141 = vcmp.eq.s32.totalorder %v1119, 1
    %vm1142 = vcmp.eq.s32.totalorder %v1122, 1
    %vm1143 = vcmp.eq.s32.totalorder %v1125, 1
    %vm1144 = vcmp.eq.s32.totalorder %v1128, 1
    %v1145 = vsel %vm1129, %v840, %v1049
    %v1146 = vsel %vm1130, %v845, %v1050
    %v1147 = vsel %vm1131, %v850, %v1051
    %v1148 = vsel %vm1132, %v855, %v1052
    %v1149 = vsel %vm1133, %v860, %v1053
    %v1150 = vsel %vm1134, %v865, %v1054
    %v1151 = vsel %vm1135, %v870, %v1055
    %v1152 = vsel %vm1136, %v875, %v1056
    %v1153 = vsel %vm1137, %v880, %v1057
    %v1154 = vsel %vm1138, %v885, %v1058
    %v1155 = vsel %vm1139, %v890, %v1059
    %v1156 = vsel %vm1140, %v895, %v1060
    %v1157 = vsel %vm1141, %v900, %v1061
    %v1158 = vsel %vm1142, %v905, %v1062
    %v1159 = vsel %vm1143, %v910, %v1063
    %v1160 = vsel %vm1144, %v915, %v1064
    %1161 = vst.msk [vmem:[#allocation4] sm:$0xff] %vm98, %v1145
    %1162 = vst.msk [vmem:[#allocation4 + $0x8] sm:$0xff] %vm98, %v1146
    %1163 = vst.msk [vmem:[#allocation4 + $0x10] sm:$0xff] %vm98, %v1147
    %1164 = vst.msk [vmem:[#allocation4 + $0x18] sm:$0xff] %vm98, %v1148
    %1165 = vst.msk [vmem:[#allocation4 + $0x20] sm:$0xff] %vm98, %v1149
    %1166 = vst.msk [vmem:[#allocation4 + $0x28] sm:$0xff] %vm98, %v1150
    %1167 = vst.msk [vmem:[#allocation4 + $0x30] sm:$0xff] %vm98, %v1151
    %1168 = vst.msk [vmem:[#allocation4 + $0x38] sm:$0xff] %vm98, %v1152
    %1169 = vst.msk [vmem:[#allocation4 + $0x40] sm:$0xff] %vm98, %v1153
    %1170 = vst.msk [vmem:[#allocation4 + $0x48] sm:$0xff] %vm98, %v1154
    %1171 = vst.msk [vmem:[#allocation4 + $0x50] sm:$0xff] %vm98, %v1155
    %1172 = vst.msk [vmem:[#allocation4 + $0x58] sm:$0xff] %vm98, %v1156
    %1173 = vst.msk [vmem:[#allocation4 + $0x60] sm:$0xff] %vm98, %v1157
    %1174 = vst.msk [vmem:[#allocation4 + $0x68] sm:$0xff] %vm98, %v1158
    %1175 = vst.msk [vmem:[#allocation4 + $0x70] sm:$0xff] %vm98, %v1159
    %1176 = vst.msk [vmem:[#allocation4 + $0x78] sm:$0xff] %vm98, %v1160
    // Predicated region
    $region18: #{tpu_custom_call.1} parent=1 // pred_check
      %p1177 = pneg %p19
    $region19: #{tpu_custom_call.1} parent=1 // pred_check_branch
      %1179 = sbr.rel (%p1177) target = $region21
    $region20: #{tpu_custom_call.1} parent=1 // pred_region
      %v1180 = vmul.f32 %v73, %v73
      %v1181 = vmul.f32 %v74, %v74
      %v1182 = vmul.f32 %v75, %v75
      %v1183 = vmul.f32 %v76, %v76
      %v1184 = vmul.f32 %v77, %v77
      %v1185 = vmul.f32 %v78, %v78
      %v1186 = vmul.f32 %v79, %v79
      %v1187 = vmul.f32 %v80, %v80
      %v1188 = vmul.f32 %v81, %v81
      %v1189 = vmul.f32 %v82, %v82
      %v1190 = vmul.f32 %v83, %v83
      %v1191 = vmul.f32 %v84, %v84
      %v1192 = vmul.f32 %v85, %v85
      %v1193 = vmul.f32 %v86, %v86
      %v1194 = vmul.f32 %v87, %v87
      %v1195 = vmul.f32 %v88, %v88
      %v1196 = vsel %vm98, %v1180, 0.0
      %1197 = vadd.xlane.f32.xlu0 %v1196
      %v1198 = vpop.xlane.xlu0 %1197
      %v1199 = vsel %vm98, %v1181, 0.0
      %1200 = vadd.xlane.f32.xlu0 %v1199
      %v1201 = vpop.xlane.xlu0 %1200
      %v1202 = vsel %vm98, %v1182, 0.0
      %1203 = vadd.xlane.f32.xlu0 %v1202
      %v1204 = vpop.xlane.xlu0 %1203
      %v1205 = vsel %vm98, %v1183, 0.0
      %1206 = vadd.xlane.f32.xlu0 %v1205
      %v1207 = vpop.xlane.xlu0 %1206
      %v1208 = vsel %vm98, %v1184, 0.0
      %1209 = vadd.xlane.f32.xlu0 %v1208
      %v1210 = vpop.xlane.xlu0 %1209
      %v1211 = vsel %vm98, %v1185, 0.0
      %1212 = vadd.xlane.f32.xlu0 %v1211
      %v1213 = vpop.xlane.xlu0 %1212
      %v1214 = vsel %vm98, %v1186, 0.0
      %1215 = vadd.xlane.f32.xlu0 %v1214
      %v1216 = vpop.xlane.xlu0 %1215
      %v1217 = vsel %vm98, %v1187, 0.0
      %1218 = vadd.xlane.f32.xlu0 %v1217
      %v1219 = vpop.xlane.xlu0 %1218
      %v1220 = vsel %vm98, %v1188, 0.0
      %1221 = vadd.xlane.f32.xlu0 %v1220
      %v1222 = vpop.xlane.xlu0 %1221
      %v1223 = vsel %vm98, %v1189, 0.0
      %1224 = vadd.xlane.f32.xlu0 %v1223
      %v1225 = vpop.xlane.xlu0 %1224
      %v1226 = vsel %vm98, %v1190, 0.0
      %1227 = vadd.xlane.f32.xlu0 %v1226
      %v1228 = vpop.xlane.xlu0 %1227
      %v1229 = vsel %vm98, %v1191, 0.0
      %1230 = vadd.xlane.f32.xlu0 %v1229
      %v1231 = vpop.xlane.xlu0 %1230
      %v1232 = vsel %vm98, %v1192, 0.0
      %1233 = vadd.xlane.f32.xlu0 %v1232
      %v1234 = vpop.xlane.xlu0 %1233
      %v1235 = vsel %vm98, %v1193, 0.0
      %1236 = vadd.xlane.f32.xlu0 %v1235
      %v1237 = vpop.xlane.xlu0 %1236
      %v1238 = vsel %vm98, %v1194, 0.0
      %1239 = vadd.xlane.f32.xlu0 %v1238
      %v1240 = vpop.xlane.xlu0 %1239
      %v1241 = vsel %vm98, %v1195, 0.0
      %1242 = vadd.xlane.f32.xlu0 %v1241
      %v1243 = vpop.xlane.xlu0 %1242
      %vm1244 = vcmp.gt.f32.partialorder %v1198, 1e-12
      %vm1245 = vcmp.gt.f32.partialorder %v1201, 1e-12
      %vm1246 = vcmp.gt.f32.partialorder %v1204, 1e-12
      %vm1247 = vcmp.gt.f32.partialorder %v1207, 1e-12
      %vm1248 = vcmp.gt.f32.partialorder %v1210, 1e-12
      %vm1249 = vcmp.gt.f32.partialorder %v1213, 1e-12
      %vm1250 = vcmp.gt.f32.partialorder %v1216, 1e-12
      %vm1251 = vcmp.gt.f32.partialorder %v1219, 1e-12
      %vm1252 = vcmp.gt.f32.partialorder %v1222, 1e-12
      %vm1253 = vcmp.gt.f32.partialorder %v1225, 1e-12
      %vm1254 = vcmp.gt.f32.partialorder %v1228, 1e-12
      %vm1255 = vcmp.gt.f32.partialorder %v1231, 1e-12
      %vm1256 = vcmp.gt.f32.partialorder %v1234, 1e-12
      %vm1257 = vcmp.gt.f32.partialorder %v1237, 1e-12
      %vm1258 = vcmp.gt.f32.partialorder %v1240, 1e-12
      %vm1259 = vcmp.gt.f32.partialorder %v1243, 1e-12
      %v1260 = vld [vmem:[#allocation4] sm:$0xff]
      %v1261 = vld [vmem:[#allocation4 + $0x8] sm:$0xff]
      %v1262 = vld [vmem:[#allocation4 + $0x10] sm:$0xff]
      %v1263 = vld [vmem:[#allocation4 + $0x18] sm:$0xff]
      %v1264 = vld [vmem:[#allocation4 + $0x20] sm:$0xff]
      %v1265 = vld [vmem:[#allocation4 + $0x28] sm:$0xff]
      %v1266 = vld [vmem:[#allocation4 + $0x30] sm:$0xff]
      %v1267 = vld [vmem:[#allocation4 + $0x38] sm:$0xff]
      %v1268 = vld [vmem:[#allocation4 + $0x40] sm:$0xff]
      %v1269 = vld [vmem:[#allocation4 + $0x48] sm:$0xff]
      %v1270 = vld [vmem:[#allocation4 + $0x50] sm:$0xff]
      %v1271 = vld [vmem:[#allocation4 + $0x58] sm:$0xff]
      %v1272 = vld [vmem:[#allocation4 + $0x60] sm:$0xff]
      %v1273 = vld [vmem:[#allocation4 + $0x68] sm:$0xff]
      %v1274 = vld [vmem:[#allocation4 + $0x70] sm:$0xff]
      %v1275 = vld [vmem:[#allocation4 + $0x78] sm:$0xff]
      %v1276 = vsel %vm1244, 1, 0
      %v1277 = vsel %vm1245, 1, 0
      %v1278 = vsel %vm1246, 1, 0
      %v1279 = vsel %vm1247, 1, 0
      %v1280 = vsel %vm1248, 1, 0
      %v1281 = vsel %vm1249, 1, 0
      %v1282 = vsel %vm1250, 1, 0
      %v1283 = vsel %vm1251, 1, 0
      %v1284 = vsel %vm1252, 1, 0
      %v1285 = vsel %vm1253, 1, 0
      %v1286 = vsel %vm1254, 1, 0
      %v1287 = vsel %vm1255, 1, 0
      %v1288 = vsel %vm1256, 1, 0
      %v1289 = vsel %vm1257, 1, 0
      %v1290 = vsel %vm1258, 1, 0
      %v1291 = vsel %vm1259, 1, 0
      %vm1292 = vcmp.eq.s32.totalorder %v1276, 1
      %vm1293 = vcmp.eq.s32.totalorder %v1277, 1
      %vm1294 = vcmp.eq.s32.totalorder %v1278, 1
      %vm1295 = vcmp.eq.s32.totalorder %v1279, 1
      %vm1296 = vcmp.eq.s32.totalorder %v1280, 1
      %vm1297 = vcmp.eq.s32.totalorder %v1281, 1
      %vm1298 = vcmp.eq.s32.totalorder %v1282, 1
      %vm1299 = vcmp.eq.s32.totalorder %v1283, 1
      %vm1300 = vcmp.eq.s32.totalorder %v1284, 1
      %vm1301 = vcmp.eq.s32.totalorder %v1285, 1
      %vm1302 = vcmp.eq.s32.totalorder %v1286, 1
      %vm1303 = vcmp.eq.s32.totalorder %v1287, 1
      %vm1304 = vcmp.eq.s32.totalorder %v1288, 1
      %vm1305 = vcmp.eq.s32.totalorder %v1289, 1
      %vm1306 = vcmp.eq.s32.totalorder %v1290, 1
      %vm1307 = vcmp.eq.s32.totalorder %v1291, 1
      %v1308 = vsel %vm1292, %v1260, 0.0
      %v1309 = vsel %vm1293, %v1261, 0.0
      %v1310 = vsel %vm1294, %v1262, 0.0
      %v1311 = vsel %vm1295, %v1263, 0.0
      %v1312 = vsel %vm1296, %v1264, 0.0
      %v1313 = vsel %vm1297, %v1265, 0.0
      %v1314 = vsel %vm1298, %v1266, 0.0
      %v1315 = vsel %vm1299, %v1267, 0.0
      %v1316 = vsel %vm1300, %v1268, 0.0
      %v1317 = vsel %vm1301, %v1269, 0.0
      %v1318 = vsel %vm1302, %v1270, 0.0
      %v1319 = vsel %vm1303, %v1271, 0.0
      %v1320 = vsel %vm1304, %v1272, 0.0
      %v1321 = vsel %vm1305, %v1273, 0.0
      %v1322 = vsel %vm1306, %v1274, 0.0
      %v1323 = vsel %vm1307, %v1275, 0.0
      %1324 = vst.msk [vmem:[%s3] sm:$0xff] %vm98, %v1308
      %1325 = vst.msk [vmem:[%s3 + $0x8] sm:$0xff] %vm98, %v1309
      %1326 = vst.msk [vmem:[%s3 + $0x10] sm:$0xff] %vm98, %v1310
      %1327 = vst.msk [vmem:[%s3 + $0x18] sm:$0xff] %vm98, %v1311
      %1328 = vst.msk [vmem:[%s3 + $0x20] sm:$0xff] %vm98, %v1312
      %1329 = vst.msk [vmem:[%s3 + $0x28] sm:$0xff] %vm98, %v1313
      %1330 = vst.msk [vmem:[%s3 + $0x30] sm:$0xff] %vm98, %v1314
      %1331 = vst.msk [vmem:[%s3 + $0x38] sm:$0xff] %vm98, %v1315
      %1332 = vst.msk [vmem:[%s3 + $0x40] sm:$0xff] %vm98, %v1316
      %1333 = vst.msk [vmem:[%s3 + $0x48] sm:$0xff] %vm98, %v1317
      %1334 = vst.msk [vmem:[%s3 + $0x50] sm:$0xff] %vm98, %v1318
      %1335 = vst.msk [vmem:[%s3 + $0x58] sm:$0xff] %vm98, %v1319
      %1336 = vst.msk [vmem:[%s3 + $0x60] sm:$0xff] %vm98, %v1320
      %1337 = vst.msk [vmem:[%s3 + $0x68] sm:$0xff] %vm98, %v1321
      %1338 = vst.msk [vmem:[%s3 + $0x70] sm:$0xff] %vm98, %v1322
      %1339 = vst.msk [vmem:[%s3 + $0x78] sm:$0xff] %vm98, %v1323
      %v1340 = vld [vmem:[#allocation2] sm:$0xff]
      %v1341 = vld [vmem:[#allocation2 + $0x8] sm:$0xff]
      %v1342 = vld [vmem:[#allocation2 + $0x10] sm:$0xff]
      %v1343 = vld [vmem:[#allocation2 + $0x18] sm:$0xff]
      %v1344 = vld [vmem:[#allocation2 + $0x20] sm:$0xff]
      %v1345 = vld [vmem:[#allocation2 + $0x28] sm:$0xff]
      %v1346 = vld [vmem:[#allocation2 + $0x30] sm:$0xff]
      %v1347 = vld [vmem:[#allocation2 + $0x38] sm:$0xff]
      %v1348 = vld [vmem:[#allocation2 + $0x40] sm:$0xff]
      %v1349 = vld [vmem:[#allocation2 + $0x48] sm:$0xff]
      %v1350 = vld [vmem:[#allocation2 + $0x50] sm:$0xff]
      %v1351 = vld [vmem:[#allocation2 + $0x58] sm:$0xff]
      %v1352 = vld [vmem:[#allocation2 + $0x60] sm:$0xff]
      %v1353 = vld [vmem:[#allocation2 + $0x68] sm:$0xff]
      %v1354 = vld [vmem:[#allocation2 + $0x70] sm:$0xff]
      %v1355 = vld [vmem:[#allocation2 + $0x78] sm:$0xff]
      %v1356 = vadd.f32 %v1340, %v1198
      %v1357 = vadd.f32 %v1341, %v1201
      %v1358 = vadd.f32 %v1342, %v1204
      %v1359 = vadd.f32 %v1343, %v1207
      %v1360 = vadd.f32 %v1344, %v1210
      %v1361 = vadd.f32 %v1345, %v1213
      %v1362 = vadd.f32 %v1346, %v1216
      %v1363 = vadd.f32 %v1347, %v1219
      %v1364 = vadd.f32 %v1348, %v1222
      %v1365 = vadd.f32 %v1349, %v1225
      %v1366 = vadd.f32 %v1350, %v1228
      %v1367 = vadd.f32 %v1351, %v1231
      %v1368 = vadd.f32 %v1352, %v1234
      %v1369 = vadd.f32 %v1353, %v1237
      %v1370 = vadd.f32 %v1354, %v1240
      %v1371 = vadd.f32 %v1355, %v1243
      %v1372 = vmax.f32 %v1356, 0.0
      %v1373 = vmax.f32 %v1357, 0.0
      %v1374 = vmax.f32 %v1358, 0.0
      %v1375 = vmax.f32 %v1359, 0.0
      %v1376 = vmax.f32 %v1360, 0.0
      %v1377 = vmax.f32 %v1361, 0.0
      %v1378 = vmax.f32 %v1362, 0.0
      %v1379 = vmax.f32 %v1363, 0.0
      %v1380 = vmax.f32 %v1364, 0.0
      %v1381 = vmax.f32 %v1365, 0.0
      %v1382 = vmax.f32 %v1366, 0.0
      %v1383 = vmax.f32 %v1367, 0.0
      %v1384 = vmax.f32 %v1368, 0.0
      %v1385 = vmax.f32 %v1369, 0.0
      %v1386 = vmax.f32 %v1370, 0.0
      %v1387 = vmax.f32 %v1371, 0.0
      %v1388 = vsel %vm1244, %v1372, 0.0
      %v1389 = vsel %vm1245, %v1373, 0.0
      %v1390 = vsel %vm1246, %v1374, 0.0
      %v1391 = vsel %vm1247, %v1375, 0.0
      %v1392 = vsel %vm1248, %v1376, 0.0
      %v1393 = vsel %vm1249, %v1377, 0.0
      %v1394 = vsel %vm1250, %v1378, 0.0
      %v1395 = vsel %vm1251, %v1379, 0.0
      %v1396 = vsel %vm1252, %v1380, 0.0
      %v1397 = vsel %vm1253, %v1381, 0.0
      %v1398 = vsel %vm1254, %v1382, 0.0
      %v1399 = vsel %vm1255, %v1383, 0.0
      %v1400 = vsel %vm1256, %v1384, 0.0
      %v1401 = vsel %vm1257, %v1385, 0.0
      %v1402 = vsel %vm1258, %v1386, 0.0
      %v1403 = vsel %vm1259, %v1387, 0.0
      %v1404 = vld [vmem:[#allocation3] sm:$0xff]
      %v1405 = vld [vmem:[#allocation3 + $0x8] sm:$0xff]
      %v1406 = vld [vmem:[#allocation3 + $0x10] sm:$0xff]
      %v1407 = vld [vmem:[#allocation3 + $0x18] sm:$0xff]
      %v1408 = vld [vmem:[#allocation3 + $0x20] sm:$0xff]
      %v1409 = vld [vmem:[#allocation3 + $0x28] sm:$0xff]
      %v1410 = vld [vmem:[#allocation3 + $0x30] sm:$0xff]
      %v1411 = vld [vmem:[#allocation3 + $0x38] sm:$0xff]
      %v1412 = vld [vmem:[#allocation3 + $0x40] sm:$0xff]
      %v1413 = vld [vmem:[#allocation3 + $0x48] sm:$0xff]
      %v1414 = vld [vmem:[#allocation3 + $0x50] sm:$0xff]
      %v1415 = vld [vmem:[#allocation3 + $0x58] sm:$0xff]
      %v1416 = vld [vmem:[#allocation3 + $0x60] sm:$0xff]
      %v1417 = vld [vmem:[#allocation3 + $0x68] sm:$0xff]
      %v1418 = vld [vmem:[#allocation3 + $0x70] sm:$0xff]
      %v1419 = vld [vmem:[#allocation3 + $0x78] sm:$0xff]
      %v1420 = vsel %vm1244, %v1404, 4294967295
      %v1421 = vsel %vm1245, %v1405, 4294967295
      %v1422 = vsel %vm1246, %v1406, 4294967295
      %v1423 = vsel %vm1247, %v1407, 4294967295
      %v1424 = vsel %vm1248, %v1408, 4294967295
      %v1425 = vsel %vm1249, %v1409, 4294967295
      %v1426 = vsel %vm1250, %v1410, 4294967295
      %v1427 = vsel %vm1251, %v1411, 4294967295
      %v1428 = vsel %vm1252, %v1412, 4294967295
      %v1429 = vsel %vm1253, %v1413, 4294967295
      %v1430 = vsel %vm1254, %v1414, 4294967295
      %v1431 = vsel %vm1255, %v1415, 4294967295
      %v1432 = vsel %vm1256, %v1416, 4294967295
      %v1433 = vsel %vm1257, %v1417, 4294967295
      %v1434 = vsel %vm1258, %v1418, 4294967295
      %v1435 = vsel %vm1259, %v1419, 4294967295
      %1436 = vxpose.xlu0.b32.start [1/16] %v1420, 128
      %1437 = vxpose.xlu0.b32.cont [2/16] %v1421, 128
      %1438 = vxpose.xlu0.b32.cont [3/16] %v1422, 128
      %1439 = vxpose.xlu0.b32.cont [4/16] %v1423, 128
      %1440 = vxpose.xlu0.b32.cont [5/16] %v1424, 128
      %1441 = vxpose.xlu0.b32.cont [6/16] %v1425, 128
      %1442 = vxpose.xlu0.b32.cont [7/16] %v1426, 128
      %1443 = vxpose.xlu0.b32.cont [8/16] %v1427, 128
      %1444 = vxpose.xlu0.b32.cont [9/16] %v1428, 128
      %1445 = vxpose.xlu0.b32.cont [10/16] %v1429, 128
      %1446 = vxpose.xlu0.b32.cont [11/16] %v1430, 128
      %1447 = vxpose.xlu0.b32.cont [12/16] %v1431, 128
      %1448 = vxpose.xlu0.b32.cont [13/16] %v1432, 128
      %1449 = vxpose.xlu0.b32.cont [14/16] %v1433, 128
      %1450 = vxpose.xlu0.b32.cont [15/16] %v1434, 128
      %1451 = vxpose.xlu0.b32.end [16/16] %v1435, 128
      %v1452 = vpop.trf.xlu0
      %v1453 = vpop.trf.xlu0
      %v1454 = vpop.trf.xlu0
      %v1455 = vpop.trf.xlu0
      %v1456 = vpop.trf.xlu0
      %v1457 = vpop.trf.xlu0
      %v1458 = vpop.trf.xlu0
      %v1459 = vpop.trf.xlu0
      %v1460 = vpop.trf.xlu0
      %v1461 = vpop.trf.xlu0
      %v1462 = vpop.trf.xlu0
      %v1463 = vpop.trf.xlu0
      %v1464 = vpop.trf.xlu0
      %v1465 = vpop.trf.xlu0
      %v1466 = vpop.trf.xlu0
      %v1467 = vpop.trf.xlu0
      %1468 = vst [vmem:[#allocation5] sm:$0x1] %v1452
      %1469 = vxpose.xlu0.b32.start [1/16] %v1388, 128
      %1470 = vxpose.xlu0.b32.cont [2/16] %v1389, 128
      %1471 = vxpose.xlu0.b32.cont [3/16] %v1390, 128
      %1472 = vxpose.xlu0.b32.cont [4/16] %v1391, 128
      %1473 = vxpose.xlu0.b32.cont [5/16] %v1392, 128
      %1474 = vxpose.xlu0.b32.cont [6/16] %v1393, 128
      %1475 = vxpose.xlu0.b32.cont [7/16] %v1394, 128
      %1476 = vxpose.xlu0.b32.cont [8/16] %v1395, 128
      %1477 = vxpose.xlu0.b32.cont [9/16] %v1396, 128
      %1478 = vxpose.xlu0.b32.cont [10/16] %v1397, 128
      %1479 = vxpose.xlu0.b32.cont [11/16] %v1398, 128
      %1480 = vxpose.xlu0.b32.cont [12/16] %v1399, 128
      %1481 = vxpose.xlu0.b32.cont [13/16] %v1400, 128
      %1482 = vxpose.xlu0.b32.cont [14/16] %v1401, 128
      %1483 = vxpose.xlu0.b32.cont [15/16] %v1402, 128
      %1484 = vxpose.xlu0.b32.end [16/16] %v1403, 128
      %v1485 = vpop.trf.xlu0
      %v1486 = vpop.trf.xlu0
      %v1487 = vpop.trf.xlu0
      %v1488 = vpop.trf.xlu0
      %v1489 = vpop.trf.xlu0
      %v1490 = vpop.trf.xlu0
      %v1491 = vpop.trf.xlu0
      %v1492 = vpop.trf.xlu0
      %v1493 = vpop.trf.xlu0
      %v1494 = vpop.trf.xlu0
      %v1495 = vpop.trf.xlu0
      %v1496 = vpop.trf.xlu0
      %v1497 = vpop.trf.xlu0
      %v1498 = vpop.trf.xlu0
      %v1499 = vpop.trf.xlu0
      %v1500 = vpop.trf.xlu0
      %1501 = vst [vmem:[#allocation7] sm:$0x1] %v1485
    $region21: #{tpu_custom_call.1} parent=1 // pred_fallthru
      _
    // Predicated region
    $region22: #{tpu_custom_call.1} parent=1 // pred_check
      _
    $region23: #{tpu_custom_call.1} parent=1 // pred_check_branch
      %1503 = sbr.rel (0) target = $region25
    $region24: #{tpu_custom_call.1} parent=1 // pred_region
      _
    $region25: #{tpu_custom_call.1} parent=1 // pred_fallthru
      _
    // Predicated region
    $region26: #{tpu_custom_call.1} parent=1 // pred_check
      _
    $region27: #{tpu_custom_call.1} parent=1 // pred_check_branch
      %1505 = sbr.rel (0) target = $region29
    $region28: #{tpu_custom_call.1} parent=1 // pred_region
      %s1507 = ssub.s32 16, 16
      %1508 = vsyncadd [#allocation6], %s1507
      %s1510 = sshll.u32 [#allocation5], 4
      %s1511 = int_to_ptr.vmem [resolvable:$true] %s1510
      %1513 = dma.vmem_to_hbm [thread:$0]  %s1511, 16, %s4, [#allocation6]
    $region29: #{tpu_custom_call.1} parent=1 // pred_fallthru
      _
    // Predicated region
    $region30: #{tpu_custom_call.1} parent=1 // pred_check
      _
    $region31: #{tpu_custom_call.1} parent=1 // pred_check_branch
      %1515 = sbr.rel (0) target = $region33
    $region32: #{tpu_custom_call.1} parent=1 // pred_region
      %s1517 = ssub.s32 16, 16
      %1518 = vsyncadd [#allocation8], %s1517
      %s1520 = sshll.u32 [#allocation7], 4
      %s1521 = int_to_ptr.vmem [resolvable:$true] %s1520
      %1523 = dma.vmem_to_hbm [thread:$0]  %s1521, 16, %s5, [#allocation8]
    $region33: #{tpu_custom_call.1} parent=1 // pred_fallthru
      _
    // Predicated region
    $region34: #{tpu_custom_call.1} parent=1 // pred_check
      _
    $region35: #{tpu_custom_call.1} parent=1 // pred_check_branch
      %1525 = sbr.rel (0) target = $region37
    $region36: #{tpu_custom_call.1} parent=1 // pred_region
      _
    $region37: #{tpu_custom_call.1} parent=1 // pred_fallthru
      _
    // Predicated region
    $region38: #{tpu_custom_call.1} parent=1 // pred_check
      _
    $region39: #{tpu_custom_call.1} parent=1 // pred_check_branch
      %1527 = sbr.rel (0) target = $region41
    $region40: #{tpu_custom_call.1} parent=1 // pred_region
      %1528 = dma.done [#allocation6], 16
    $region41: #{tpu_custom_call.1} parent=1 // pred_fallthru
      _
    // Predicated region
    $region42: #{tpu_custom_call.1} parent=1 // pred_check
      _
    $region43: #{tpu_custom_call.1} parent=1 // pred_check_branch
      %1530 = sbr.rel (0) target = $region45
    $region44: #{tpu_custom_call.1} parent=1 // pred_region
      %1531 = dma.done [#allocation8], 16
    $region45: #{tpu_custom_call.1} parent=1 // pred_fallthru
      _
    %1532 = vsyncpa [#allocation6], 1
    %1533 = vsyncpa [#allocation8], 1

</llo_original>
